<compile_context>
chip_gen: v5e
topology: v5e:2x2
jax: 0.10.0
libtpu: 0.0.40
codegen_flags: <defaults>
</compile_context>

<pallas_src>
import functools

import jax
import jax.numpy as jnp
from jax.experimental import pallas as pl
from jax.experimental.pallas import tpu as pltpu

INPUT_SIZE = 128
HIDDEN = 128          # config.residual_config
OUTPUT_SIZE = 2
BN_EPS = 1e-5
MAX_TB = 512          # batch tile (rows) -- >=512 reaches ~85% HBM roofline


# --------------------------------------------------------------------------
# in-kernel helpers (shared by the three passes)
# --------------------------------------------------------------------------
def _input_layer(x_bf16, w_in, b_in):
    h = jnp.dot(x_bf16, w_in, preferred_element_type=jnp.float32) + b_in
    return jnp.maximum(h, 0.0)                                   # (TB, H) f32


def _pre_bn(h_f32, w, b):
    # bf16 MXU inputs, f32 accumulation
    return jnp.dot(h_f32.astype(w.dtype), w,
                   preferred_element_type=jnp.float32) + b       # (TB, H) f32


def _bn_relu_residual(out_f32, h_f32, scale, shift):
    # folded BatchNorm (scale/shift) + ReLU + residual add, all f32
    return jnp.maximum(out_f32 * scale + shift, 0.0) + h_f32


def _masked_partial_stats(out_f32, tb, batch):
    """Per-tile sum / sumsq over valid rows, reduced to an (8, H) partial."""
    rows = (jax.lax.broadcasted_iota(jnp.int32, (tb, 1), 0)
            + pl.program_id(0) * tb)
    o = jnp.where(rows < batch, out_f32, 0.0)
    h = o.shape[-1]
    # group rows into (8,128) vreg tiles and add them -> cheap VPU partial
    s = o.reshape(tb // 8, 8, h).sum(axis=0)                     # (8, H)
    ss = (o * o).reshape(tb // 8, 8, h).sum(axis=0)              # (8, H)
    return s, ss


# --------------------------------------------------------------------------
# pass 1: stats of block-1 pre-BN activation
# --------------------------------------------------------------------------
def _stats1_kernel(tb, batch,
                   x_ref, w_in_ref, b_in_ref, w1_ref, b1_ref,
                   sum_ref, sumsq_ref):
    h0 = _input_layer(x_ref[...], w_in_ref[...], b_in_ref[...])
    out1 = _pre_bn(h0, w1_ref[...], b1_ref[...])
    s, ss = _masked_partial_stats(out1, tb, batch)
    sum_ref[...] = s
    sumsq_ref[...] = ss


# --------------------------------------------------------------------------
# pass 2: stats of block-2 pre-BN activation (needs folded BN1)
# --------------------------------------------------------------------------
def _stats2_kernel(tb, batch,
                   x_ref, w_in_ref, b_in_ref, w1_ref, b1_ref,
                   s1_ref, t1_ref, w2_ref, b2_ref,
                   sum_ref, sumsq_ref):
    h0 = _input_layer(x_ref[...], w_in_ref[...], b_in_ref[...])
    out1 = _pre_bn(h0, w1_ref[...], b1_ref[...])
    h1 = _bn_relu_residual(out1, h0, s1_ref[...], t1_ref[...])
    out2 = _pre_bn(h1, w2_ref[...], b2_ref[...])
    s, ss = _masked_partial_stats(out2, tb, batch)
    sum_ref[...] = s
    sumsq_ref[...] = ss


# --------------------------------------------------------------------------
# pass 3: full forward with both folded BNs, lane-padded output layer
# --------------------------------------------------------------------------
def _final_kernel(x_ref, w_in_ref, b_in_ref, w1_ref, b1_ref,
                  s1_ref, t1_ref, w2_ref, b2_ref, s2_ref, t2_ref,
                  w_out_ref, b_out_ref, y_ref):
    h0 = _input_layer(x_ref[...], w_in_ref[...], b_in_ref[...])
    out1 = _pre_bn(h0, w1_ref[...], b1_ref[...])
    h1 = _bn_relu_residual(out1, h0, s1_ref[...], t1_ref[...])
    out2 = _pre_bn(h1, w2_ref[...], b2_ref[...])
    h2 = _bn_relu_residual(out2, h1, s2_ref[...], t2_ref[...])
    y = jnp.dot(h2.astype(w_out_ref.dtype), w_out_ref[...],
                preferred_element_type=jnp.float32) + b_out_ref[...]
    y_ref[...] = y.astype(y_ref.dtype)                           # (TB, 128)


# --------------------------------------------------------------------------
# wrapper
# --------------------------------------------------------------------------
@jax.jit
def residual_network_forward(x, params):
    """x: (B, INPUT_SIZE) float32. params: dict of pre-transposed weights."""
    B = x.shape[0]
    H = HIDDEN

    # batch tiling (pad B up to a multiple of the tile; padded rows are masked
    # out of the BN statistics and sliced off the output)
    b8 = ((B + 7) // 8) * 8
    TB = min(MAX_TB, b8)
    tiles = pl.cdiv(b8, TB)
    B_pad = tiles * TB

    xb = x.astype(jnp.bfloat16)
    if B_pad != B:
        xb = jnp.pad(xb, ((0, B_pad - B), (0, 0)))

    # bf16 weights for the MXU; biases / BN params stay f32
    w_in = params["w_in"].astype(jnp.bfloat16)
    w1 = params["w1"].astype(jnp.bfloat16)
    w2 = params["w2"].astype(jnp.bfloat16)
    w_out = (jnp.zeros((H, H), jnp.float32)
             .at[:, :OUTPUT_SIZE].set(params["w_out"])
             .astype(jnp.bfloat16))                              # lane-padded
    b_out = jnp.zeros((1, H), jnp.float32).at[:, :OUTPUT_SIZE].set(
        params["b_out"])
    b_in, b1, b2 = params["b_in"], params["b1"], params["b2"]

    # BlockSpecs: x/out tiled over batch, weights resident (constant index map)
    x_spec = pl.BlockSpec((TB, INPUT_SIZE), lambda i: (i, 0))
    w_spec = pl.BlockSpec((H, H), lambda i: (0, 0))
    v_spec = pl.BlockSpec((1, H), lambda i: (0, 0))       # bias / scale / shift
    stat_spec = pl.BlockSpec((8, H), lambda i: (i, 0))    # per-tile partials
    y_spec = pl.BlockSpec((TB, H), lambda i: (i, 0))
    stat_shape = jax.ShapeDtypeStruct((8 * tiles, H), jnp.float32)

    cp = pltpu.CompilerParams(
        dimension_semantics=("parallel",),     # both TCs on v7x; neutral v5e/v6e
        vmem_limit_bytes=32 * 1024 * 1024,     # safe on v5e/v6e/v7x
    )

    def _cost(n_matmuls, out_bytes):
        return pl.CostEstimate(
            flops=2 * B_pad * H * H * n_matmuls,
            transcendentals=0,
            bytes_accessed=(B_pad * INPUT_SIZE * 2      # bf16 x stream
                            + n_matmuls * H * H * 2     # bf16 weights
                            + out_bytes),
        )

    def fold_bn(psum, psumsq, gamma, beta):
        """Reduce per-tile partials -> folded scale/shift (full-batch stats)."""
        s = jnp.sum(psum, axis=0)
        ss = jnp.sum(psumsq, axis=0)
        mean = s / B
        var = ss / B - mean * mean                      # biased, as PyTorch BN
        inv = jax.lax.rsqrt(var + BN_EPS)
        scale = gamma.reshape(-1) * inv
        shift = beta.reshape(-1) - mean * scale
        return scale.reshape(1, H), shift.reshape(1, H)

    # ---- pass 1: block-1 batch statistics --------------------------------
    s1_raw, ss1_raw = pl.pallas_call(
        functools.partial(_stats1_kernel, TB, B),
        grid=(tiles,),
        in_specs=[x_spec, w_spec, v_spec, w_spec, v_spec],
        out_specs=(stat_spec, stat_spec),
        out_shape=(stat_shape, stat_shape),
        compiler_params=cp,
        cost_estimate=_cost(2, 2 * 8 * tiles * H * 4),
    )(xb, w_in, b_in, w1, b1)
    scale1, shift1 = fold_bn(s1_raw, ss1_raw, params["g1"], params["beta1"])

    # ---- pass 2: block-2 batch statistics --------------------------------
    s2_raw, ss2_raw = pl.pallas_call(
        functools.partial(_stats2_kernel, TB, B),
        grid=(tiles,),
        in_specs=[x_spec, w_spec, v_spec, w_spec, v_spec,
                  v_spec, v_spec, w_spec, v_spec],
        out_specs=(stat_spec, stat_spec),
        out_shape=(stat_shape, stat_shape),
        compiler_params=cp,
        cost_estimate=_cost(3, 2 * 8 * tiles * H * 4),
    )(xb, w_in, b_in, w1, b1, scale1, shift1, w2, b2)
    scale2, shift2 = fold_bn(s2_raw, ss2_raw, params["g2"], params["beta2"])

    # ---- pass 3: final forward, lane-dense (TB, 128) output --------------
    y_pad = pl.pallas_call(
        _final_kernel,
        grid=(tiles,),
        in_specs=[x_spec, w_spec, v_spec, w_spec, v_spec,
                  v_spec, v_spec, w_spec, v_spec, v_spec, v_spec,
                  w_spec, v_spec],
        out_specs=y_spec,
        out_shape=jax.ShapeDtypeStruct((B_pad, H), jnp.float32),
        compiler_params=cp,
        cost_estimate=_cost(4, B_pad * H * 4),
    )(xb, w_in, b_in, w1, b1, scale1, shift1, w2, b2, scale2, shift2,
      w_out, b_out)

    return y_pad[:B, :OUTPUT_SIZE]


# --------------------------------------------------------------------------
# parameters & reference
# --------------------------------------------------------------------------
def init_params(key):
    """Deterministic synthetic parameters (PyTorch-shaped, pre-transposed)."""
    ks = jax.random.split(key, 8)

    def linear(kw, kb, fan_in, fan_out):
        bound = 1.0 / jnp.sqrt(fan_in)
        w = jax.random.uniform(kw, (fan_out, fan_in), jnp.float32, -bound, bound)
        b = jax.random.uniform(kb, (fan_out,), jnp.float32, -bound, bound)
        return w.T, b.reshape(1, fan_out)       # (in,out) weight, (1,out) bias

    w_in, b_in = linear(ks[0], ks[1], INPUT_SIZE, HIDDEN)
    w1, b1 = linear(ks[2], ks[3], HIDDEN, HIDDEN)
    w2, b2 = linear(ks[4], ks[5], HIDDEN, HIDDEN)
    w_out, b_out = linear(ks[6], ks[7], HIDDEN, OUTPUT_SIZE)

    ones = jnp.ones((1, HIDDEN), jnp.float32)
    zeros = jnp.zeros((1, HIDDEN), jnp.float32)
    return {
        "w_in": w_in, "b_in": b_in,
        "w1": w1, "b1": b1, "g1": ones, "beta1": zeros,
        "w2": w2, "b2": b2, "g2": ones, "beta2": zeros,
        "w_out": w_out, "b_out": b_out,
    }


def _reference_forward(x, p):
    """Plain-JAX reference mirroring the kernel numerics (bf16 MXU, f32 BN)."""
    bf, f32 = jnp.bfloat16, jnp.float32
    h = jnp.maximum(
        jnp.dot(x.astype(bf), p["w_in"].astype(bf),
                preferred_element_type=f32) + p["b_in"], 0.0)

    def block(h, w, b, g, beta):
        out = jnp.dot(h.astype(bf), w.astype(bf),
                      preferred_element_type=f32) + b
        mean = out.mean(0, keepdims=True)
        var = (out * out).mean(0, keepdims=True) - mean * mean
        out = g * (out - mean) * jax.lax.rsqrt(var + BN_EPS) + beta
        return jnp.maximum(out, 0.0) + h

    h = block(h, p["w1"], p["b1"], p["g1"], p["beta1"])
    h = block(h, p["w2"], p["b2"], p["g2"], p["beta2"])
    return jnp.dot(h.astype(bf), p["w_out"].astype(bf),
                   preferred_element_type=f32) + p["b_out"]


if __name__ == "__main__":
    key = jax.random.PRNGKey(0)
    k_x, k_p = jax.random.split(key)

    B = 6   # not a multiple of 8 -> exercises padding + stats masking
    x = jax.random.normal(k_x, (B, INPUT_SIZE), jnp.float32)
    params = init_params(k_p)

    out = jax.block_until_ready(residual_network_forward(x, params))
    ref = _reference_forward(x, params)

    assert out.shape == (B, OUTPUT_SIZE)
    assert jnp.allclose(out, ref, atol=5e-3, rtol=5e-3), float(
        jnp.max(jnp.abs(out - ref)))

    print("KERNEL_OK")
</pallas_src>

<mosaic_0001>
module attributes {stable_mosaic.version = 11 : i64} {
  func.func @_stats1_kernel(%arg0: i32, %arg1: memref<8x128xbf16, #tpu.memory_space<vmem>>, %arg2: memref<128x128xbf16, #tpu.memory_space<vmem>>, %arg3: memref<1x128xf32, #tpu.memory_space<vmem>>, %arg4: memref<128x128xbf16, #tpu.memory_space<vmem>>, %arg5: memref<1x128xf32, #tpu.memory_space<vmem>>, %arg6: memref<8x128xf32, #tpu.memory_space<vmem>>, %arg7: memref<8x128xf32, #tpu.memory_space<vmem>>) attributes {dimension_semantics = [#tpu.dimension_semantics<parallel>], iteration_bounds = array<i64: 1>, scalar_prefetch = 0 : i64, scratch_operands = 0 : i64, tpu.core_type = #tpu.core_type<tc>, window_params = [{transform_indices = @transform_0, window_bounds = array<i64: 8, 128>}, {pipeline_mode = #tpu.pipeline_mode<synchronous>, transform_indices = @transform_1, window_bounds = array<i64: 128, 128>}, {pipeline_mode = #tpu.pipeline_mode<synchronous>, transform_indices = @transform_2, window_bounds = array<i64: 1, 128>}, {pipeline_mode = #tpu.pipeline_mode<synchronous>, transform_indices = @transform_3, window_bounds = array<i64: 128, 128>}, {pipeline_mode = #tpu.pipeline_mode<synchronous>, transform_indices = @transform_4, window_bounds = array<i64: 1, 128>}, {transform_indices = @transform_5, window_bounds = array<i64: 8, 128>}, {transform_indices = @transform_6, window_bounds = array<i64: 8, 128>}]} {
    %c0 = arith.constant 0 : index
    %c0_0 = arith.constant 0 : index
    %0 = vector.load %arg1[%c0, %c0_0] : memref<8x128xbf16, #tpu.memory_space<vmem>>, vector<8x128xbf16>
    %c0_1 = arith.constant 0 : index
    %c0_2 = arith.constant 0 : index
    %1 = vector.load %arg2[%c0_1, %c0_2] : memref<128x128xbf16, #tpu.memory_space<vmem>>, vector<128x128xbf16>
    %c0_3 = arith.constant 0 : index
    %c0_4 = arith.constant 0 : index
    %2 = vector.load %arg3[%c0_3, %c0_4] : memref<1x128xf32, #tpu.memory_space<vmem>>, vector<1x128xf32>
    %cst = arith.constant dense<0.000000e+00> : vector<8x128xf32>
    %3 = tpu.matmul %0, %1, %cst {dimension_numbers = #tpu.dot_dimension_numbers<[1], [0], [0], [1], [0, 0, 1, 1], [], []>} : vector<8x128xbf16>, vector<128x128xbf16>, vector<8x128xf32> -> vector<8x128xf32>
    %4 = vector.broadcast %2 : vector<1x128xf32> to vector<8x128xf32>
    %5 = arith.addf %3, %4 : vector<8x128xf32>
    %cst_5 = arith.constant 0.000000e+00 : f32
    %6 = vector.broadcast %cst_5 : f32 to vector<8x128xf32>
    %7 = arith.maximumf %5, %6 : vector<8x128xf32>
    %c0_6 = arith.constant 0 : index
    %c0_7 = arith.constant 0 : index
    %8 = vector.load %arg4[%c0_6, %c0_7] : memref<128x128xbf16, #tpu.memory_space<vmem>>, vector<128x128xbf16>
    %c0_8 = arith.constant 0 : index
    %c0_9 = arith.constant 0 : index
    %9 = vector.load %arg5[%c0_8, %c0_9] : memref<1x128xf32, #tpu.memory_space<vmem>>, vector<1x128xf32>
    %10 = arith.truncf %7 : vector<8x128xf32> to vector<8x128xbf16>
    %cst_10 = arith.constant dense<0.000000e+00> : vector<8x128xf32>
    %11 = tpu.matmul %10, %8, %cst_10 {dimension_numbers = #tpu.dot_dimension_numbers<[1], [0], [0], [1], [0, 0, 1, 1], [], []>} : vector<8x128xbf16>, vector<128x128xbf16>, vector<8x128xf32> -> vector<8x128xf32>
    %12 = vector.broadcast %9 : vector<1x128xf32> to vector<8x128xf32>
    %13 = arith.addf %11, %12 : vector<8x128xf32>
    %14 = tpu.iota {dimensions = array<i32: 0>} : vector<8x1xi32>
    %c8_i32 = arith.constant 8 : i32
    %15 = arith.muli %arg0, %c8_i32 : i32
    %16 = vector.broadcast %15 : i32 to vector<8x1xi32>
    %17 = arith.addi %14, %16 : vector<8x1xi32>
    %c6_i32 = arith.constant 6 : i32
    %18 = vector.broadcast %c6_i32 : i32 to vector<8x1xi32>
    %19 = arith.cmpi slt, %17, %18 : vector<8x1xi32>
    %cst_11 = arith.constant 0.000000e+00 : f32
    %20 = vector.shape_cast %19 : vector<8x1xi1> to vector<8x1xi1>
    %21 = vector.broadcast %20 : vector<8x1xi1> to vector<8x128xi1>
    %22 = vector.broadcast %cst_11 : f32 to vector<8x128xf32>
    %23 = arith.select %21, %13, %22 : vector<8x128xi1>, vector<8x128xf32>
    %24 = vector.shape_cast %23 : vector<8x128xf32> to vector<1x8x128xf32>
    %cst_12 = arith.constant dense<0.000000e+00> : vector<8x128xf32>
    %25 = vector.multi_reduction <add>, %24, %cst_12 [0] : vector<1x8x128xf32> to vector<8x128xf32>
    %26 = arith.mulf %23, %23 : vector<8x128xf32>
    %27 = vector.shape_cast %26 : vector<8x128xf32> to vector<1x8x128xf32>
    %cst_13 = arith.constant dense<0.000000e+00> : vector<8x128xf32>
    %28 = vector.multi_reduction <add>, %27, %cst_13 [0] : vector<1x8x128xf32> to vector<8x128xf32>
    %c0_14 = arith.constant 0 : index
    %c0_15 = arith.constant 0 : index
    %29 = vector.load %arg6[%c0_14, %c0_15] : memref<8x128xf32, #tpu.memory_space<vmem>>, vector<8x128xf32>
    tpu.vector_store %arg6[%c0_14, %c0_15], %25 {strides = array<i32>} : memref<8x128xf32, #tpu.memory_space<vmem>>, vector<8x128xf32>,
    %c0_16 = arith.constant 0 : index
    %c0_17 = arith.constant 0 : index
    %30 = vector.load %arg7[%c0_16, %c0_17] : memref<8x128xf32, #tpu.memory_space<vmem>>, vector<8x128xf32>
    tpu.vector_store %arg7[%c0_16, %c0_17], %28 {strides = array<i32>} : memref<8x128xf32, #tpu.memory_space<vmem>>, vector<8x128xf32>,
    return
  }
  func.func @transform_0(%arg0: i32) -> (i32, i32) {
    %c0_i32 = arith.constant 0 : i32
    %c0_i32_0 = arith.constant 0 : i32
    return %arg0, %c0_i32 : i32, i32
  }
  func.func @transform_1(%arg0: i32) -> (i32, i32) {
    %c0_i32 = arith.constant 0 : i32
    %c0_i32_0 = arith.constant 0 : i32
    %c0_i32_1 = arith.constant 0 : i32
    return %c0_i32, %c0_i32_0 : i32, i32
  }
  func.func @transform_2(%arg0: i32) -> (i32, i32) {
    %c0_i32 = arith.constant 0 : i32
    %c0_i32_0 = arith.constant 0 : i32
    %c0_i32_1 = arith.constant 0 : i32
    return %c0_i32, %c0_i32_0 : i32, i32
  }
  func.func @transform_3(%arg0: i32) -> (i32, i32) {
    %c0_i32 = arith.constant 0 : i32
    %c0_i32_0 = arith.constant 0 : i32
    %c0_i32_1 = arith.constant 0 : i32
    return %c0_i32, %c0_i32_0 : i32, i32
  }
  func.func @transform_4(%arg0: i32) -> (i32, i32) {
    %c0_i32 = arith.constant 0 : i32
    %c0_i32_0 = arith.constant 0 : i32
    %c0_i32_1 = arith.constant 0 : i32
    return %c0_i32, %c0_i32_0 : i32, i32
  }
  func.func @transform_5(%arg0: i32) -> (i32, i32) {
    %c0_i32 = arith.constant 0 : i32
    %c0_i32_0 = arith.constant 0 : i32
    return %arg0, %c0_i32 : i32, i32
  }
  func.func @transform_6(%arg0: i32) -> (i32, i32) {
    %c0_i32 = arith.constant 0 : i32
    %c0_i32_0 = arith.constant 0 : i32
    return %arg0, %c0_i32 : i32, i32
  }
}

module attributes {stable_mosaic.version = 11 : i64} {
  func.func @_stats2_kernel(%arg0: i32, %arg1: memref<8x128xbf16, #tpu.memory_space<vmem>>, %arg2: memref<128x128xbf16, #tpu.memory_space<vmem>>, %arg3: memref<1x128xf32, #tpu.memory_space<vmem>>, %arg4: memref<128x128xbf16, #tpu.memory_space<vmem>>, %arg5: memref<1x128xf32, #tpu.memory_space<vmem>>, %arg6: memref<1x128xf32, #tpu.memory_space<vmem>>, %arg7: memref<1x128xf32, #tpu.memory_space<vmem>>, %arg8: memref<128x128xbf16, #tpu.memory_space<vmem>>, %arg9: memref<1x128xf32, #tpu.memory_space<vmem>>, %arg10: memref<8x128xf32, #tpu.memory_space<vmem>>, %arg11: memref<8x128xf32, #tpu.memory_space<vmem>>) attributes {dimension_semantics = [#tpu.dimension_semantics<parallel>], iteration_bounds = array<i64: 1>, scalar_prefetch = 0 : i64, scratch_operands = 0 : i64, tpu.core_type = #tpu.core_type<tc>, window_params = [{transform_indices = @transform_0, window_bounds = array<i64: 8, 128>}, {pipeline_mode = #tpu.pipeline_mode<synchronous>, transform_indices = @transform_1, window_bounds = array<i64: 128, 128>}, {pipeline_mode = #tpu.pipeline_mode<synchronous>, transform_indices = @transform_2, window_bounds = array<i64: 1, 128>}, {pipeline_mode = #tpu.pipeline_mode<synchronous>, transform_indices = @transform_3, window_bounds = array<i64: 128, 128>}, {pipeline_mode = #tpu.pipeline_mode<synchronous>, transform_indices = @transform_4, window_bounds = array<i64: 1, 128>}, {pipeline_mode = #tpu.pipeline_mode<synchronous>, transform_indices = @transform_5, window_bounds = array<i64: 1, 128>}, {pipeline_mode = #tpu.pipeline_mode<synchronous>, transform_indices = @transform_6, window_bounds = array<i64: 1, 128>}, {pipeline_mode = #tpu.pipeline_mode<synchronous>, transform_indices = @transform_7, window_bounds = array<i64: 128, 128>}, {pipeline_mode = #tpu.pipeline_mode<synchronous>, transform_indices = @transform_8, window_bounds = array<i64: 1, 128>}, {transform_indices = @transform_9, window_bounds = array<i64: 8, 128>}, {transform_indices = @transform_10, window_bounds = array<i64: 8, 128>}]} {
    %c0 = arith.constant 0 : index
    %c0_0 = arith.constant 0 : index
    %0 = vector.load %arg1[%c0, %c0_0] : memref<8x128xbf16, #tpu.memory_space<vmem>>, vector<8x128xbf16>
    %c0_1 = arith.constant 0 : index
    %c0_2 = arith.constant 0 : index
    %1 = vector.load %arg2[%c0_1, %c0_2] : memref<128x128xbf16, #tpu.memory_space<vmem>>, vector<128x128xbf16>
    %c0_3 = arith.constant 0 : index
    %c0_4 = arith.constant 0 : index
    %2 = vector.load %arg3[%c0_3, %c0_4] : memref<1x128xf32, #tpu.memory_space<vmem>>, vector<1x128xf32>
    %cst = arith.constant dense<0.000000e+00> : vector<8x128xf32>
    %3 = tpu.matmul %0, %1, %cst {dimension_numbers = #tpu.dot_dimension_numbers<[1], [0], [0], [1], [0, 0, 1, 1], [], []>} : vector<8x128xbf16>, vector<128x128xbf16>, vector<8x128xf32> -> vector<8x128xf32>
    %4 = vector.broadcast %2 : vector<1x128xf32> to vector<8x128xf32>
    %5 = arith.addf %3, %4 : vector<8x128xf32>
    %cst_5 = arith.constant 0.000000e+00 : f32
    %6 = vector.broadcast %cst_5 : f32 to vector<8x128xf32>
    %7 = arith.maximumf %5, %6 : vector<8x128xf32>
    %c0_6 = arith.constant 0 : index
    %c0_7 = arith.constant 0 : index
    %8 = vector.load %arg4[%c0_6, %c0_7] : memref<128x128xbf16, #tpu.memory_space<vmem>>, vector<128x128xbf16>
    %c0_8 = arith.constant 0 : index
    %c0_9 = arith.constant 0 : index
    %9 = vector.load %arg5[%c0_8, %c0_9] : memref<1x128xf32, #tpu.memory_space<vmem>>, vector<1x128xf32>
    %10 = arith.truncf %7 : vector<8x128xf32> to vector<8x128xbf16>
    %cst_10 = arith.constant dense<0.000000e+00> : vector<8x128xf32>
    %11 = tpu.matmul %10, %8, %cst_10 {dimension_numbers = #tpu.dot_dimension_numbers<[1], [0], [0], [1], [0, 0, 1, 1], [], []>} : vector<8x128xbf16>, vector<128x128xbf16>, vector<8x128xf32> -> vector<8x128xf32>
    %12 = vector.broadcast %9 : vector<1x128xf32> to vector<8x128xf32>
    %13 = arith.addf %11, %12 : vector<8x128xf32>
    %c0_11 = arith.constant 0 : index
    %c0_12 = arith.constant 0 : index
    %14 = vector.load %arg6[%c0_11, %c0_12] : memref<1x128xf32, #tpu.memory_space<vmem>>, vector<1x128xf32>
    %c0_13 = arith.constant 0 : index
    %c0_14 = arith.constant 0 : index
    %15 = vector.load %arg7[%c0_13, %c0_14] : memref<1x128xf32, #tpu.memory_space<vmem>>, vector<1x128xf32>
    %16 = vector.broadcast %14 : vector<1x128xf32> to vector<8x128xf32>
    %17 = arith.mulf %13, %16 : vector<8x128xf32>
    %18 = vector.broadcast %15 : vector<1x128xf32> to vector<8x128xf32>
    %19 = arith.addf %17, %18 : vector<8x128xf32>
    %cst_15 = arith.constant 0.000000e+00 : f32
    %20 = vector.broadcast %cst_15 : f32 to vector<8x128xf32>
    %21 = arith.maximumf %19, %20 : vector<8x128xf32>
    %22 = arith.addf %21, %7 : vector<8x128xf32>
    %c0_16 = arith.constant 0 : index
    %c0_17 = arith.constant 0 : index
    %23 = vector.load %arg8[%c0_16, %c0_17] : memref<128x128xbf16, #tpu.memory_space<vmem>>, vector<128x128xbf16>
    %c0_18 = arith.constant 0 : index
    %c0_19 = arith.constant 0 : index
    %24 = vector.load %arg9[%c0_18, %c0_19] : memref<1x128xf32, #tpu.memory_space<vmem>>, vector<1x128xf32>
    %25 = arith.truncf %22 : vector<8x128xf32> to vector<8x128xbf16>
    %cst_20 = arith.constant dense<0.000000e+00> : vector<8x128xf32>
    %26 = tpu.matmul %25, %23, %cst_20 {dimension_numbers = #tpu.dot_dimension_numbers<[1], [0], [0], [1], [0, 0, 1, 1], [], []>} : vector<8x128xbf16>, vector<128x128xbf16>, vector<8x128xf32> -> vector<8x128xf32>
    %27 = vector.broadcast %24 : vector<1x128xf32> to vector<8x128xf32>
    %28 = arith.addf %26, %27 : vector<8x128xf32>
    %29 = tpu.iota {dimensions = array<i32: 0>} : vector<8x1xi32>
    %c8_i32 = arith.constant 8 : i32
    %30 = arith.muli %arg0, %c8_i32 : i32
    %31 = vector.broadcast %30 : i32 to vector<8x1xi32>
    %32 = arith.addi %29, %31 : vector<8x1xi32>
    %c6_i32 = arith.constant 6 : i32
    %33 = vector.broadcast %c6_i32 : i32 to vector<8x1xi32>
    %34 = arith.cmpi slt, %32, %33 : vector<8x1xi32>
    %cst_21 = arith.constant 0.000000e+00 : f32
    %35 = vector.shape_cast %34 : vector<8x1xi1> to vector<8x1xi1>
    %36 = vector.broadcast %35 : vector<8x1xi1> to vector<8x128xi1>
    %37 = vector.broadcast %cst_21 : f32 to vector<8x128xf32>
    %38 = arith.select %36, %28, %37 : vector<8x128xi1>, vector<8x128xf32>
    %39 = vector.shape_cast %38 : vector<8x128xf32> to vector<1x8x128xf32>
    %cst_22 = arith.constant dense<0.000000e+00> : vector<8x128xf32>
    %40 = vector.multi_reduction <add>, %39, %cst_22 [0] : vector<1x8x128xf32> to vector<8x128xf32>
    %41 = arith.mulf %38, %38 : vector<8x128xf32>
    %42 = vector.shape_cast %41 : vector<8x128xf32> to vector<1x8x128xf32>
    %cst_23 = arith.constant dense<0.000000e+00> : vector<8x128xf32>
    %43 = vector.multi_reduction <add>, %42, %cst_23 [0] : vector<1x8x128xf32> to vector<8x128xf32>
    %c0_24 = arith.constant 0 : index
    %c0_25 = arith.constant 0 : index
    %44 = vector.load %arg10[%c0_24, %c0_25] : memref<8x128xf32, #tpu.memory_space<vmem>>, vector<8x128xf32>
    tpu.vector_store %arg10[%c0_24, %c0_25], %40 {strides = array<i32>} : memref<8x128xf32, #tpu.memory_space<vmem>>, vector<8x128xf32>,
    %c0_26 = arith.constant 0 : index
    %c0_27 = arith.constant 0 : index
    %45 = vector.load %arg11[%c0_26, %c0_27] : memref<8x128xf32, #tpu.memory_space<vmem>>, vector<8x128xf32>
    tpu.vector_store %arg11[%c0_26, %c0_27], %43 {strides = array<i32>} : memref<8x128xf32, #tpu.memory_space<vmem>>, vector<8x128xf32>,
    return
  }
  func.func @transform_0(%arg0: i32) -> (i32, i32) {
    %c0_i32 = arith.constant 0 : i32
    %c0_i32_0 = arith.constant 0 : i32
    return %arg0, %c0_i32 : i32, i32
  }
  func.func @transform_1(%arg0: i32) -> (i32, i32) {
    %c0_i32 = arith.constant 0 : i32
    %c0_i32_0 = arith.constant 0 : i32
    %c0_i32_1 = arith.constant 0 : i32
    return %c0_i32, %c0_i32_0 : i32, i32
  }
  func.func @transform_2(%arg0: i32) -> (i32, i32) {
    %c0_i32 = arith.constant 0 : i32
    %c0_i32_0 = arith.constant 0 : i32
    %c0_i32_1 = arith.constant 0 : i32
    return %c0_i32, %c0_i32_0 : i32, i32
  }
  func.func @transform_3(%arg0: i32) -> (i32, i32) {
    %c0_i32 = arith.constant 0 : i32
    %c0_i32_0 = arith.constant 0 : i32
    %c0_i32_1 = arith.constant 0 : i32
    return %c0_i32, %c0_i32_0 : i32, i32
  }
  func.func @transform_4(%arg0: i32) -> (i32, i32) {
    %c0_i32 = arith.constant 0 : i32
    %c0_i32_0 = arith.constant 0 : i32
    %c0_i32_1 = arith.constant 0 : i32
    return %c0_i32, %c0_i32_0 : i32, i32
  }
  func.func @transform_5(%arg0: i32) -> (i32, i32) {
    %c0_i32 = arith.constant 0 : i32
    %c0_i32_0 = arith.constant 0 : i32
    %c0_i32_1 = arith.constant 0 : i32
    return %c0_i32, %c0_i32_0 : i32, i32
  }
  func.func @transform_6(%arg0: i32) -> (i32, i32) {
    %c0_i32 = arith.constant 0 : i32
    %c0_i32_0 = arith.constant 0 : i32
    %c0_i32_1 = arith.constant 0 : i32
    return %c0_i32, %c0_i32_0 : i32, i32
  }
  func.func @transform_7(%arg0: i32) -> (i32, i32) {
    %c0_i32 = arith.constant 0 : i32
    %c0_i32_0 = arith.constant 0 : i32
    %c0_i32_1 = arith.constant 0 : i32
    return %c0_i32, %c0_i32_0 : i32, i32
  }
  func.func @transform_8(%arg0: i32) -> (i32, i32) {
    %c0_i32 = arith.constant 0 : i32
    %c0_i32_0 = arith.constant 0 : i32
    %c0_i32_1 = arith.constant 0 : i32
    return %c0_i32, %c0_i32_0 : i32, i32
  }
  func.func @transform_9(%arg0: i32) -> (i32, i32) {
    %c0_i32 = arith.constant 0 : i32
    %c0_i32_0 = arith.constant 0 : i32
    return %arg0, %c0_i32 : i32, i32
  }
  func.func @transform_10(%arg0: i32) -> (i32, i32) {
    %c0_i32 = arith.constant 0 : i32
    %c0_i32_0 = arith.constant 0 : i32
    return %arg0, %c0_i32 : i32, i32
  }
}

module attributes {stable_mosaic.version = 11 : i64} {
  func.func @_final_kernel(%arg0: i32, %arg1: memref<8x128xbf16, #tpu.memory_space<vmem>>, %arg2: memref<128x128xbf16, #tpu.memory_space<vmem>>, %arg3: memref<1x128xf32, #tpu.memory_space<vmem>>, %arg4: memref<128x128xbf16, #tpu.memory_space<vmem>>, %arg5: memref<1x128xf32, #tpu.memory_space<vmem>>, %arg6: memref<1x128xf32, #tpu.memory_space<vmem>>, %arg7: memref<1x128xf32, #tpu.memory_space<vmem>>, %arg8: memref<128x128xbf16, #tpu.memory_space<vmem>>, %arg9: memref<1x128xf32, #tpu.memory_space<vmem>>, %arg10: memref<1x128xf32, #tpu.memory_space<vmem>>, %arg11: memref<1x128xf32, #tpu.memory_space<vmem>>, %arg12: memref<128x128xbf16, #tpu.memory_space<vmem>>, %arg13: memref<1x128xf32, #tpu.memory_space<vmem>>, %arg14: memref<8x128xf32, #tpu.memory_space<vmem>>) attributes {dimension_semantics = [#tpu.dimension_semantics<parallel>], iteration_bounds = array<i64: 1>, scalar_prefetch = 0 : i64, scratch_operands = 0 : i64, tpu.core_type = #tpu.core_type<tc>, window_params = [{transform_indices = @transform_0, window_bounds = array<i64: 8, 128>}, {pipeline_mode = #tpu.pipeline_mode<synchronous>, transform_indices = @transform_1, window_bounds = array<i64: 128, 128>}, {pipeline_mode = #tpu.pipeline_mode<synchronous>, transform_indices = @transform_2, window_bounds = array<i64: 1, 128>}, {pipeline_mode = #tpu.pipeline_mode<synchronous>, transform_indices = @transform_3, window_bounds = array<i64: 128, 128>}, {pipeline_mode = #tpu.pipeline_mode<synchronous>, transform_indices = @transform_4, window_bounds = array<i64: 1, 128>}, {pipeline_mode = #tpu.pipeline_mode<synchronous>, transform_indices = @transform_5, window_bounds = array<i64: 1, 128>}, {pipeline_mode = #tpu.pipeline_mode<synchronous>, transform_indices = @transform_6, window_bounds = array<i64: 1, 128>}, {pipeline_mode = #tpu.pipeline_mode<synchronous>, transform_indices = @transform_7, window_bounds = array<i64: 128, 128>}, {pipeline_mode = #tpu.pipeline_mode<synchronous>, transform_indices = @transform_8, window_bounds = array<i64: 1, 128>}, {pipeline_mode = #tpu.pipeline_mode<synchronous>, transform_indices = @transform_9, window_bounds = array<i64: 1, 128>}, {pipeline_mode = #tpu.pipeline_mode<synchronous>, transform_indices = @transform_10, window_bounds = array<i64: 1, 128>}, {pipeline_mode = #tpu.pipeline_mode<synchronous>, transform_indices = @transform_11, window_bounds = array<i64: 128, 128>}, {pipeline_mode = #tpu.pipeline_mode<synchronous>, transform_indices = @transform_12, window_bounds = array<i64: 1, 128>}, {transform_indices = @transform_13, window_bounds = array<i64: 8, 128>}]} {
    %c0 = arith.constant 0 : index
    %c0_0 = arith.constant 0 : index
    %0 = vector.load %arg1[%c0, %c0_0] : memref<8x128xbf16, #tpu.memory_space<vmem>>, vector<8x128xbf16>
    %c0_1 = arith.constant 0 : index
    %c0_2 = arith.constant 0 : index
    %1 = vector.load %arg2[%c0_1, %c0_2] : memref<128x128xbf16, #tpu.memory_space<vmem>>, vector<128x128xbf16>
    %c0_3 = arith.constant 0 : index
    %c0_4 = arith.constant 0 : index
    %2 = vector.load %arg3[%c0_3, %c0_4] : memref<1x128xf32, #tpu.memory_space<vmem>>, vector<1x128xf32>
    %cst = arith.constant dense<0.000000e+00> : vector<8x128xf32>
    %3 = tpu.matmul %0, %1, %cst {dimension_numbers = #tpu.dot_dimension_numbers<[1], [0], [0], [1], [0, 0, 1, 1], [], []>} : vector<8x128xbf16>, vector<128x128xbf16>, vector<8x128xf32> -> vector<8x128xf32>
    %4 = vector.broadcast %2 : vector<1x128xf32> to vector<8x128xf32>
    %5 = arith.addf %3, %4 : vector<8x128xf32>
    %cst_5 = arith.constant 0.000000e+00 : f32
    %6 = vector.broadcast %cst_5 : f32 to vector<8x128xf32>
    %7 = arith.maximumf %5, %6 : vector<8x128xf32>
    %c0_6 = arith.constant 0 : index
    %c0_7 = arith.constant 0 : index
    %8 = vector.load %arg4[%c0_6, %c0_7] : memref<128x128xbf16, #tpu.memory_space<vmem>>, vector<128x128xbf16>
    %c0_8 = arith.constant 0 : index
    %c0_9 = arith.constant 0 : index
    %9 = vector.load %arg5[%c0_8, %c0_9] : memref<1x128xf32, #tpu.memory_space<vmem>>, vector<1x128xf32>
    %10 = arith.truncf %7 : vector<8x128xf32> to vector<8x128xbf16>
    %cst_10 = arith.constant dense<0.000000e+00> : vector<8x128xf32>
    %11 = tpu.matmul %10, %8, %cst_10 {dimension_numbers = #tpu.dot_dimension_numbers<[1], [0], [0], [1], [0, 0, 1, 1], [], []>} : vector<8x128xbf16>, vector<128x128xbf16>, vector<8x128xf32> -> vector<8x128xf32>
    %12 = vector.broadcast %9 : vector<1x128xf32> to vector<8x128xf32>
    %13 = arith.addf %11, %12 : vector<8x128xf32>
    %c0_11 = arith.constant 0 : index
    %c0_12 = arith.constant 0 : index
    %14 = vector.load %arg6[%c0_11, %c0_12] : memref<1x128xf32, #tpu.memory_space<vmem>>, vector<1x128xf32>
    %c0_13 = arith.constant 0 : index
    %c0_14 = arith.constant 0 : index
    %15 = vector.load %arg7[%c0_13, %c0_14] : memref<1x128xf32, #tpu.memory_space<vmem>>, vector<1x128xf32>
    %16 = vector.broadcast %14 : vector<1x128xf32> to vector<8x128xf32>
    %17 = arith.mulf %13, %16 : vector<8x128xf32>
    %18 = vector.broadcast %15 : vector<1x128xf32> to vector<8x128xf32>
    %19 = arith.addf %17, %18 : vector<8x128xf32>
    %cst_15 = arith.constant 0.000000e+00 : f32
    %20 = vector.broadcast %cst_15 : f32 to vector<8x128xf32>
    %21 = arith.maximumf %19, %20 : vector<8x128xf32>
    %22 = arith.addf %21, %7 : vector<8x128xf32>
    %c0_16 = arith.constant 0 : index
    %c0_17 = arith.constant 0 : index
    %23 = vector.load %arg8[%c0_16, %c0_17] : memref<128x128xbf16, #tpu.memory_space<vmem>>, vector<128x128xbf16>
    %c0_18 = arith.constant 0 : index
    %c0_19 = arith.constant 0 : index
    %24 = vector.load %arg9[%c0_18, %c0_19] : memref<1x128xf32, #tpu.memory_space<vmem>>, vector<1x128xf32>
    %25 = arith.truncf %22 : vector<8x128xf32> to vector<8x128xbf16>
    %cst_20 = arith.constant dense<0.000000e+00> : vector<8x128xf32>
    %26 = tpu.matmul %25, %23, %cst_20 {dimension_numbers = #tpu.dot_dimension_numbers<[1], [0], [0], [1], [0, 0, 1, 1], [], []>} : vector<8x128xbf16>, vector<128x128xbf16>, vector<8x128xf32> -> vector<8x128xf32>
    %27 = vector.broadcast %24 : vector<1x128xf32> to vector<8x128xf32>
    %28 = arith.addf %26, %27 : vector<8x128xf32>
    %c0_21 = arith.constant 0 : index
    %c0_22 = arith.constant 0 : index
    %29 = vector.load %arg10[%c0_21, %c0_22] : memref<1x128xf32, #tpu.memory_space<vmem>>, vector<1x128xf32>
    %c0_23 = arith.constant 0 : index
    %c0_24 = arith.constant 0 : index
    %30 = vector.load %arg11[%c0_23, %c0_24] : memref<1x128xf32, #tpu.memory_space<vmem>>, vector<1x128xf32>
    %31 = vector.broadcast %29 : vector<1x128xf32> to vector<8x128xf32>
    %32 = arith.mulf %28, %31 : vector<8x128xf32>
    %33 = vector.broadcast %30 : vector<1x128xf32> to vector<8x128xf32>
    %34 = arith.addf %32, %33 : vector<8x128xf32>
    %cst_25 = arith.constant 0.000000e+00 : f32
    %35 = vector.broadcast %cst_25 : f32 to vector<8x128xf32>
    %36 = arith.maximumf %34, %35 : vector<8x128xf32>
    %37 = arith.addf %36, %22 : vector<8x128xf32>
    %38 = arith.truncf %37 : vector<8x128xf32> to vector<8x128xbf16>
    %c0_26 = arith.constant 0 : index
    %c0_27 = arith.constant 0 : index
    %39 = vector.load %arg12[%c0_26, %c0_27] : memref<128x128xbf16, #tpu.memory_space<vmem>>, vector<128x128xbf16>
    %cst_28 = arith.constant dense<0.000000e+00> : vector<8x128xf32>
    %40 = tpu.matmul %38, %39, %cst_28 {dimension_numbers = #tpu.dot_dimension_numbers<[1], [0], [0], [1], [0, 0, 1, 1], [], []>} : vector<8x128xbf16>, vector<128x128xbf16>, vector<8x128xf32> -> vector<8x128xf32>
    %c0_29 = arith.constant 0 : index
    %c0_30 = arith.constant 0 : index
    %41 = vector.load %arg13[%c0_29, %c0_30] : memref<1x128xf32, #tpu.memory_space<vmem>>, vector<1x128xf32>
    %42 = vector.broadcast %41 : vector<1x128xf32> to vector<8x128xf32>
    %43 = arith.addf %40, %42 : vector<8x128xf32>
    %c0_31 = arith.constant 0 : index
    %c0_32 = arith.constant 0 : index
    %44 = vector.load %arg14[%c0_31, %c0_32] : memref<8x128xf32, #tpu.memory_space<vmem>>, vector<8x128xf32>
    tpu.vector_store %arg14[%c0_31, %c0_32], %43 {strides = array<i32>} : memref<8x128xf32, #tpu.memory_space<vmem>>, vector<8x128xf32>,
    return
  }
  func.func @transform_0(%arg0: i32) -> (i32, i32) {
    %c0_i32 = arith.constant 0 : i32
    %c0_i32_0 = arith.constant 0 : i32
    return %arg0, %c0_i32 : i32, i32
  }
  func.func @transform_1(%arg0: i32) -> (i32, i32) {
    %c0_i32 = arith.constant 0 : i32
    %c0_i32_0 = arith.constant 0 : i32
    %c0_i32_1 = arith.constant 0 : i32
    return %c0_i32, %c0_i32_0 : i32, i32
  }
  func.func @transform_2(%arg0: i32) -> (i32, i32) {
    %c0_i32 = arith.constant 0 : i32
    %c0_i32_0 = arith.constant 0 : i32
    %c0_i32_1 = arith.constant 0 : i32
    return %c0_i32, %c0_i32_0 : i32, i32
  }
  func.func @transform_3(%arg0: i32) -> (i32, i32) {
    %c0_i32 = arith.constant 0 : i32
    %c0_i32_0 = arith.constant 0 : i32
    %c0_i32_1 = arith.constant 0 : i32
    return %c0_i32, %c0_i32_0 : i32, i32
  }
  func.func @transform_4(%arg0: i32) -> (i32, i32) {
    %c0_i32 = arith.constant 0 : i32
    %c0_i32_0 = arith.constant 0 : i32
    %c0_i32_1 = arith.constant 0 : i32
    return %c0_i32, %c0_i32_0 : i32, i32
  }
  func.func @transform_5(%arg0: i32) -> (i32, i32) {
    %c0_i32 = arith.constant 0 : i32
    %c0_i32_0 = arith.constant 0 : i32
    %c0_i32_1 = arith.constant 0 : i32
    return %c0_i32, %c0_i32_0 : i32, i32
  }
  func.func @transform_6(%arg0: i32) -> (i32, i32) {
    %c0_i32 = arith.constant 0 : i32
    %c0_i32_0 = arith.constant 0 : i32
    %c0_i32_1 = arith.constant 0 : i32
    return %c0_i32, %c0_i32_0 : i32, i32
  }
  func.func @transform_7(%arg0: i32) -> (i32, i32) {
    %c0_i32 = arith.constant 0 : i32
    %c0_i32_0 = arith.constant 0 : i32
    %c0_i32_1 = arith.constant 0 : i32
    return %c0_i32, %c0_i32_0 : i32, i32
  }
  func.func @transform_8(%arg0: i32) -> (i32, i32) {
    %c0_i32 = arith.constant 0 : i32
    %c0_i32_0 = arith.constant 0 : i32
    %c0_i32_1 = arith.constant 0 : i32
    return %c0_i32, %c0_i32_0 : i32, i32
  }
  func.func @transform_9(%arg0: i32) -> (i32, i32) {
    %c0_i32 = arith.constant 0 : i32
    %c0_i32_0 = arith.constant 0 : i32
    %c0_i32_1 = arith.constant 0 : i32
    return %c0_i32, %c0_i32_0 : i32, i32
  }
  func.func @transform_10(%arg0: i32) -> (i32, i32) {
    %c0_i32 = arith.constant 0 : i32
    %c0_i32_0 = arith.constant 0 : i32
    %c0_i32_1 = arith.constant 0 : i32
    return %c0_i32, %c0_i32_0 : i32, i32
  }
  func.func @transform_11(%arg0: i32) -> (i32, i32) {
    %c0_i32 = arith.constant 0 : i32
    %c0_i32_0 = arith.constant 0 : i32
    %c0_i32_1 = arith.constant 0 : i32
    return %c0_i32, %c0_i32_0 : i32, i32
  }
  func.func @transform_12(%arg0: i32) -> (i32, i32) {
    %c0_i32 = arith.constant 0 : i32
    %c0_i32_0 = arith.constant 0 : i32
    %c0_i32_1 = arith.constant 0 : i32
    return %c0_i32, %c0_i32_0 : i32, i32
  }
  func.func @transform_13(%arg0: i32) -> (i32, i32) {
    %c0_i32 = arith.constant 0 : i32
    %c0_i32_0 = arith.constant 0 : i32
    return %arg0, %c0_i32 : i32, i32
  }
}

</mosaic_0001>

<llo_original>
// kernel: residual_network_forward.3
$region0: #{residual_network_forward.3}
  #allocation0 [shape = 'u32[]', space=smem, size = 0x4, offset = 0x4, fixed_abs, tag = 'smem constant byte address 0x4 - core index']
  #allocation1 [shape = 'u32[72,128]{1,0:T(1,128)}', space=vmem, size = 0x9000, scoped, tag = 'internal scratch']
  %s0 = inlined_call_operand.vmem [shape: bf16[8,128], index: 0, kind: input, shape index: {}]
  %s1 = inlined_call_operand.vmem [shape: bf16[128,128], index: 1, kind: input, shape index: {}]
  %s2 = inlined_call_operand.vmem [shape: f32[1,128], index: 2, kind: input, shape index: {}]
  %s3 = inlined_call_operand.vmem [shape: bf16[128,128], index: 3, kind: input, shape index: {}]
  %s4 = inlined_call_operand.vmem [shape: f32[1,128], index: 4, kind: input, shape index: {}]
  %s5 = inlined_call_operand.vmem [shape: f32[8,128], index: 5, kind: output, shape index: {0}]
  %s6 = inlined_call_operand.vmem [shape: f32[8,128], index: 6, kind: output, shape index: {1}]
  %7 = xla_tuple %s5, %s6
  %s8 = sld [smem:[#allocation0]]
  $region38: #{residual_network_forward.3} parent=0
    _
  %s10 = ssub.s32 1, %s8
  %s11 = scalar_select 0, %s10, %s8
  // Predicated region
  $region2: #{residual_network_forward.3} parent=0 // pred_check
    _
  $region3: #{residual_network_forward.3} parent=0 // pred_check_branch
    %13 = sbr.rel (0) target = $region5
  $region4: #{residual_network_forward.3} parent=0 // pred_region
    _
  $region5: #{residual_network_forward.3} parent=0 // pred_fallthru
    _
  // Predicated region
  $region6: #{residual_network_forward.3} parent=0 // pred_check
    _
  $region7: #{residual_network_forward.3} parent=0 // pred_check_branch
    %15 = sbr.rel (0) target = $region9
  $region8: #{residual_network_forward.3} parent=0 // pred_region
    _
  $region9: #{residual_network_forward.3} parent=0 // pred_fallthru
    _
  // Predicated region
  $region10: #{residual_network_forward.3} parent=0 // pred_check
    _
  $region11: #{residual_network_forward.3} parent=0 // pred_check_branch
    %17 = sbr.rel (0) target = $region13
  $region12: #{residual_network_forward.3} parent=0 // pred_region
    _
  $region13: #{residual_network_forward.3} parent=0 // pred_fallthru
    _
  // Predicated region
  $region14: #{residual_network_forward.3} parent=0 // pred_check
    _
  $region15: #{residual_network_forward.3} parent=0 // pred_check_branch
    %19 = sbr.rel (0) target = $region17
  $region16: #{residual_network_forward.3} parent=0 // pred_region
    _
  $region17: #{residual_network_forward.3} parent=0 // pred_fallthru
    _
  // Predicated region
  $region18: #{residual_network_forward.3} parent=0 // pred_check
    _
  $region19: #{residual_network_forward.3} parent=0 // pred_check_branch
    %21 = sbr.rel (0) target = $region21
  $region20: #{residual_network_forward.3} parent=0 // pred_region
    _
  $region21: #{residual_network_forward.3} parent=0 // pred_fallthru
    _
  %v22 = vld [vmem:[%s0] sm:$0xf]
  %v23 = vld [vmem:[%s1] sm:$0xf]
  %v24 = vld [vmem:[%s1 + $0x4] sm:$0xf]
  %v25 = vld [vmem:[%s1 + $0x8] sm:$0xf]
  %v26 = vld [vmem:[%s1 + $0xc] sm:$0xf]
  %v27 = vld [vmem:[%s1 + $0x10] sm:$0xf]
  %v28 = vld [vmem:[%s1 + $0x14] sm:$0xf]
  %v29 = vld [vmem:[%s1 + $0x18] sm:$0xf]
  %v30 = vld [vmem:[%s1 + $0x1c] sm:$0xf]
  %v31 = vld [vmem:[%s1 + $0x20] sm:$0xf]
  %v32 = vld [vmem:[%s1 + $0x24] sm:$0xf]
  %v33 = vld [vmem:[%s1 + $0x28] sm:$0xf]
  %v34 = vld [vmem:[%s1 + $0x2c] sm:$0xf]
  %v35 = vld [vmem:[%s1 + $0x30] sm:$0xf]
  %v36 = vld [vmem:[%s1 + $0x34] sm:$0xf]
  %v37 = vld [vmem:[%s1 + $0x38] sm:$0xf]
  %v38 = vld [vmem:[%s1 + $0x3c] sm:$0xf]
  %v39 = vld [vmem:[%s2] sm:$0x1]
  %v41 = vperm.slane %v39, 0
  %v59 = vunpack.c.l.b16 %v23
  %v60 = vunpack.c.l.b16 %v24
  %v61 = vunpack.c.l.b16 %v25
  %v62 = vunpack.c.l.b16 %v26
  %v63 = vunpack.c.l.b16 %v27
  %v64 = vunpack.c.l.b16 %v28
  %v65 = vunpack.c.l.b16 %v29
  %v66 = vunpack.c.l.b16 %v30
  %v67 = vunpack.c.l.b16 %v31
  %v68 = vunpack.c.l.b16 %v32
  %v69 = vunpack.c.l.b16 %v33
  %v70 = vunpack.c.l.b16 %v34
  %v71 = vunpack.c.l.b16 %v35
  %v72 = vunpack.c.l.b16 %v36
  %v73 = vunpack.c.l.b16 %v37
  %v74 = vunpack.c.l.b16 %v38
  %v75 = vpack.c.b16 %v60, %v59
  %v76 = vpack.c.b16 %v62, %v61
  %v77 = vpack.c.b16 %v64, %v63
  %v78 = vpack.c.b16 %v66, %v65
  %v79 = vpack.c.b16 %v68, %v67
  %v80 = vpack.c.b16 %v70, %v69
  %v81 = vpack.c.b16 %v72, %v71
  %v82 = vpack.c.b16 %v74, %v73
  %91 = vmatpush.bf16.msra.mxu0 %v82
  %92 = vmatpush.bf16.msra.mxu0 %v81
  %93 = vmatpush.bf16.msra.mxu0 %v80
  %94 = vmatpush.bf16.msra.mxu0 %v79
  %95 = vmatpush.bf16.msra.mxu0 %v78
  %96 = vmatpush.bf16.msra.mxu0 %v77
  %97 = vmatpush.bf16.msra.mxu0 %v76
  %98 = vmatpush.bf16.msra.mxu0 %v75
  %99 = vmatmul.bf16.gmra.mxu0 %v22
  %v100 = vpop.f32.mrf.mxu0
  %v101 = vadd.f32 %v41, %v100
  %v102 = vpop.f32.mrf.mxu0
  %103 = vdwg.mxu0
  %v104 = vmax.f32 %v101, 0.0
  %v105 = vld [vmem:[%s3] sm:$0xf]
  %v106 = vld [vmem:[%s3 + $0x4] sm:$0xf]
  %v107 = vld [vmem:[%s3 + $0x8] sm:$0xf]
  %v108 = vld [vmem:[%s3 + $0xc] sm:$0xf]
  %v109 = vld [vmem:[%s3 + $0x10] sm:$0xf]
  %v110 = vld [vmem:[%s3 + $0x14] sm:$0xf]
  %v111 = vld [vmem:[%s3 + $0x18] sm:$0xf]
  %v112 = vld [vmem:[%s3 + $0x1c] sm:$0xf]
  %v113 = vld [vmem:[%s3 + $0x20] sm:$0xf]
  %v114 = vld [vmem:[%s3 + $0x24] sm:$0xf]
  %v115 = vld [vmem:[%s3 + $0x28] sm:$0xf]
  %v116 = vld [vmem:[%s3 + $0x2c] sm:$0xf]
  %v117 = vld [vmem:[%s3 + $0x30] sm:$0xf]
  %v118 = vld [vmem:[%s3 + $0x34] sm:$0xf]
  %v119 = vld [vmem:[%s3 + $0x38] sm:$0xf]
  %v120 = vld [vmem:[%s3 + $0x3c] sm:$0xf]
  %v121 = vld [vmem:[%s4] sm:$0x1]
  %v122 = vpack.c.bf16 %v104, %v104
  %v124 = vperm.slane %v121, 0
  %v142 = vunpack.c.l.b16 %v105
  %v143 = vunpack.c.l.b16 %v106
  %v144 = vunpack.c.l.b16 %v107
  %v145 = vunpack.c.l.b16 %v108
  %v146 = vunpack.c.l.b16 %v109
  %v147 = vunpack.c.l.b16 %v110
  %v148 = vunpack.c.l.b16 %v111
  %v149 = vunpack.c.l.b16 %v112
  %v150 = vunpack.c.l.b16 %v113
  %v151 = vunpack.c.l.b16 %v114
  %v152 = vunpack.c.l.b16 %v115
  %v153 = vunpack.c.l.b16 %v116
  %v154 = vunpack.c.l.b16 %v117
  %v155 = vunpack.c.l.b16 %v118
  %v156 = vunpack.c.l.b16 %v119
  %v157 = vunpack.c.l.b16 %v120
  %v158 = vpack.c.b16 %v143, %v142
  %v159 = vpack.c.b16 %v145, %v144
  %v160 = vpack.c.b16 %v147, %v146
  %v161 = vpack.c.b16 %v149, %v148
  %v162 = vpack.c.b16 %v151, %v150
  %v163 = vpack.c.b16 %v153, %v152
  %v164 = vpack.c.b16 %v155, %v154
  %v165 = vpack.c.b16 %v157, %v156
  %174 = vmatpush.bf16.msra.mxu0 %v165
  %175 = vmatpush.bf16.msra.mxu0 %v164
  %176 = vmatpush.bf16.msra.mxu0 %v163
  %177 = vmatpush.bf16.msra.mxu0 %v162
  %178 = vmatpush.bf16.msra.mxu0 %v161
  %179 = vmatpush.bf16.msra.mxu0 %v160
  %180 = vmatpush.bf16.msra.mxu0 %v159
  %181 = vmatpush.bf16.msra.mxu0 %v158
  %182 = vmatmul.bf16.gmra.mxu0 %v122
  %v183 = vpop.f32.mrf.mxu0
  %v184 = vadd.f32 %v124, %v183
  %v185 = vpop.f32.mrf.mxu0
  %186 = vdwg.mxu0
  %v187 = vlaneseq
  %v188 = vshrl.u32 %v187, 7
  %s189 = smul.u32 0, 8
  %v190 = vstv %s189
  %v191 = vadd.s32 %v188, %v190
  %vm192 = vcmp.lt.s32.totalorder %v191, 6
  %v193 = vsel %vm192, 1, 0
  %vm194 = vcmp.eq.s32.totalorder %v193, 1
  %v195 = vsel %vm194, %v184, 0.0
  %v196 = vadd.f32 %v195, 0.0
  %v197 = vmul.f32 %v195, %v195
  %v198 = vadd.f32 %v197, 0.0
  %199 = vst [vmem:[%s5] sm:$0xff] %v196
  %200 = vst [vmem:[%s6] sm:$0xff] %v198
  // Predicated region
  $region22: #{residual_network_forward.3} parent=0 // pred_check
    _
  $region23: #{residual_network_forward.3} parent=0 // pred_check_branch
    %202 = sbr.rel (0) target = $region25
  $region24: #{residual_network_forward.3} parent=0 // pred_region
    _
  $region25: #{residual_network_forward.3} parent=0 // pred_fallthru
    _
  // Predicated region
  $region26: #{residual_network_forward.3} parent=0 // pred_check
    _
  $region27: #{residual_network_forward.3} parent=0 // pred_check_branch
    %204 = sbr.rel (0) target = $region29
  $region28: #{residual_network_forward.3} parent=0 // pred_region
    _
  $region29: #{residual_network_forward.3} parent=0 // pred_fallthru
    _
  // Predicated region
  $region30: #{residual_network_forward.3} parent=0 // pred_check
    _
  $region31: #{residual_network_forward.3} parent=0 // pred_check_branch
    %206 = sbr.rel (0) target = $region33
  $region32: #{residual_network_forward.3} parent=0 // pred_region
    _
  $region33: #{residual_network_forward.3} parent=0 // pred_fallthru
    _
  // Predicated region
  $region34: #{residual_network_forward.3} parent=0 // pred_check
    _
  $region35: #{residual_network_forward.3} parent=0 // pred_check_branch
    %208 = sbr.rel (0) target = $region37
  $region36: #{residual_network_forward.3} parent=0 // pred_region
    _
  $region37: #{residual_network_forward.3} parent=0 // pred_fallthru
    _

// kernel: residual_network_forward.4
$region0: #{residual_network_forward.4}
  #allocation0 [shape = 'u32[]', space=smem, size = 0x4, offset = 0x4, fixed_abs, tag = 'smem constant byte address 0x4 - core index']
  #allocation1 [shape = 'u32[72,128]{1,0:T(1,128)}', space=vmem, size = 0x9000, scoped, tag = 'internal scratch']
  %s0 = inlined_call_operand.vmem [shape: bf16[8,128], index: 0, kind: input, shape index: {}]
  %s1 = inlined_call_operand.vmem [shape: bf16[128,128], index: 1, kind: input, shape index: {}]
  %s2 = inlined_call_operand.vmem [shape: f32[1,128], index: 2, kind: input, shape index: {}]
  %s3 = inlined_call_operand.vmem [shape: bf16[128,128], index: 3, kind: input, shape index: {}]
  %s4 = inlined_call_operand.vmem [shape: f32[1,128], index: 4, kind: input, shape index: {}]
  %s5 = inlined_call_operand.vmem [shape: f32[1,128], index: 5, kind: input, shape index: {}]
  %s6 = inlined_call_operand.vmem [shape: f32[1,128], index: 6, kind: input, shape index: {}]
  %s7 = inlined_call_operand.vmem [shape: bf16[128,128], index: 7, kind: input, shape index: {}]
  %s8 = inlined_call_operand.vmem [shape: f32[1,128], index: 8, kind: input, shape index: {}]
  %s9 = inlined_call_operand.vmem [shape: f32[8,128], index: 9, kind: output, shape index: {0}]
  %s10 = inlined_call_operand.vmem [shape: f32[8,128], index: 10, kind: output, shape index: {1}]
  %11 = xla_tuple %s9, %s10
  %s12 = sld [smem:[#allocation0]]
  $region54: #{residual_network_forward.4} parent=0
    _
  %s14 = ssub.s32 1, %s12
  %s15 = scalar_select 0, %s14, %s12
  // Predicated region
  $region2: #{residual_network_forward.4} parent=0 // pred_check
    _
  $region3: #{residual_network_forward.4} parent=0 // pred_check_branch
    %17 = sbr.rel (0) target = $region5
  $region4: #{residual_network_forward.4} parent=0 // pred_region
    _
  $region5: #{residual_network_forward.4} parent=0 // pred_fallthru
    _
  // Predicated region
  $region6: #{residual_network_forward.4} parent=0 // pred_check
    _
  $region7: #{residual_network_forward.4} parent=0 // pred_check_branch
    %19 = sbr.rel (0) target = $region9
  $region8: #{residual_network_forward.4} parent=0 // pred_region
    _
  $region9: #{residual_network_forward.4} parent=0 // pred_fallthru
    _
  // Predicated region
  $region10: #{residual_network_forward.4} parent=0 // pred_check
    _
  $region11: #{residual_network_forward.4} parent=0 // pred_check_branch
    %21 = sbr.rel (0) target = $region13
  $region12: #{residual_network_forward.4} parent=0 // pred_region
    _
  $region13: #{residual_network_forward.4} parent=0 // pred_fallthru
    _
  // Predicated region
  $region14: #{residual_network_forward.4} parent=0 // pred_check
    _
  $region15: #{residual_network_forward.4} parent=0 // pred_check_branch
    %23 = sbr.rel (0) target = $region17
  $region16: #{residual_network_forward.4} parent=0 // pred_region
    _
  $region17: #{residual_network_forward.4} parent=0 // pred_fallthru
    _
  // Predicated region
  $region18: #{residual_network_forward.4} parent=0 // pred_check
    _
  $region19: #{residual_network_forward.4} parent=0 // pred_check_branch
    %25 = sbr.rel (0) target = $region21
  $region20: #{residual_network_forward.4} parent=0 // pred_region
    _
  $region21: #{residual_network_forward.4} parent=0 // pred_fallthru
    _
  // Predicated region
  $region22: #{residual_network_forward.4} parent=0 // pred_check
    _
  $region23: #{residual_network_forward.4} parent=0 // pred_check_branch
    %27 = sbr.rel (0) target = $region25
  $region24: #{residual_network_forward.4} parent=0 // pred_region
    _
  $region25: #{residual_network_forward.4} parent=0 // pred_fallthru
    _
  // Predicated region
  $region26: #{residual_network_forward.4} parent=0 // pred_check
    _
  $region27: #{residual_network_forward.4} parent=0 // pred_check_branch
    %29 = sbr.rel (0) target = $region29
  $region28: #{residual_network_forward.4} parent=0 // pred_region
    _
  $region29: #{residual_network_forward.4} parent=0 // pred_fallthru
    _
  // Predicated region
  $region30: #{residual_network_forward.4} parent=0 // pred_check
    _
  $region31: #{residual_network_forward.4} parent=0 // pred_check_branch
    %31 = sbr.rel (0) target = $region33
  $region32: #{residual_network_forward.4} parent=0 // pred_region
    _
  $region33: #{residual_network_forward.4} parent=0 // pred_fallthru
    _
  // Predicated region
  $region34: #{residual_network_forward.4} parent=0 // pred_check
    _
  $region35: #{residual_network_forward.4} parent=0 // pred_check_branch
    %33 = sbr.rel (0) target = $region37
  $region36: #{residual_network_forward.4} parent=0 // pred_region
    _
  $region37: #{residual_network_forward.4} parent=0 // pred_fallthru
    _
  %v34 = vld [vmem:[%s0] sm:$0xf]
  %v35 = vld [vmem:[%s1] sm:$0xf]
  %v36 = vld [vmem:[%s1 + $0x4] sm:$0xf]
  %v37 = vld [vmem:[%s1 + $0x8] sm:$0xf]
  %v38 = vld [vmem:[%s1 + $0xc] sm:$0xf]
  %v39 = vld [vmem:[%s1 + $0x10] sm:$0xf]
  %v40 = vld [vmem:[%s1 + $0x14] sm:$0xf]
  %v41 = vld [vmem:[%s1 + $0x18] sm:$0xf]
  %v42 = vld [vmem:[%s1 + $0x1c] sm:$0xf]
  %v43 = vld [vmem:[%s1 + $0x20] sm:$0xf]
  %v44 = vld [vmem:[%s1 + $0x24] sm:$0xf]
  %v45 = vld [vmem:[%s1 + $0x28] sm:$0xf]
  %v46 = vld [vmem:[%s1 + $0x2c] sm:$0xf]
  %v47 = vld [vmem:[%s1 + $0x30] sm:$0xf]
  %v48 = vld [vmem:[%s1 + $0x34] sm:$0xf]
  %v49 = vld [vmem:[%s1 + $0x38] sm:$0xf]
  %v50 = vld [vmem:[%s1 + $0x3c] sm:$0xf]
  %v51 = vld [vmem:[%s2] sm:$0x1]
  %v53 = vperm.slane %v51, 0
  %v71 = vunpack.c.l.b16 %v35
  %v72 = vunpack.c.l.b16 %v36
  %v73 = vunpack.c.l.b16 %v37
  %v74 = vunpack.c.l.b16 %v38
  %v75 = vunpack.c.l.b16 %v39
  %v76 = vunpack.c.l.b16 %v40
  %v77 = vunpack.c.l.b16 %v41
  %v78 = vunpack.c.l.b16 %v42
  %v79 = vunpack.c.l.b16 %v43
  %v80 = vunpack.c.l.b16 %v44
  %v81 = vunpack.c.l.b16 %v45
  %v82 = vunpack.c.l.b16 %v46
  %v83 = vunpack.c.l.b16 %v47
  %v84 = vunpack.c.l.b16 %v48
  %v85 = vunpack.c.l.b16 %v49
  %v86 = vunpack.c.l.b16 %v50
  %v87 = vpack.c.b16 %v72, %v71
  %v88 = vpack.c.b16 %v74, %v73
  %v89 = vpack.c.b16 %v76, %v75
  %v90 = vpack.c.b16 %v78, %v77
  %v91 = vpack.c.b16 %v80, %v79
  %v92 = vpack.c.b16 %v82, %v81
  %v93 = vpack.c.b16 %v84, %v83
  %v94 = vpack.c.b16 %v86, %v85
  %103 = vmatpush.bf16.msra.mxu0 %v94
  %104 = vmatpush.bf16.msra.mxu0 %v93
  %105 = vmatpush.bf16.msra.mxu0 %v92
  %106 = vmatpush.bf16.msra.mxu0 %v91
  %107 = vmatpush.bf16.msra.mxu0 %v90
  %108 = vmatpush.bf16.msra.mxu0 %v89
  %109 = vmatpush.bf16.msra.mxu0 %v88
  %110 = vmatpush.bf16.msra.mxu0 %v87
  %111 = vmatmul.bf16.gmra.mxu0 %v34
  %v112 = vpop.f32.mrf.mxu0
  %v113 = vadd.f32 %v53, %v112
  %v114 = vpop.f32.mrf.mxu0
  %115 = vdwg.mxu0
  %v116 = vmax.f32 %v113, 0.0
  %v117 = vld [vmem:[%s3] sm:$0xf]
  %v118 = vld [vmem:[%s3 + $0x4] sm:$0xf]
  %v119 = vld [vmem:[%s3 + $0x8] sm:$0xf]
  %v120 = vld [vmem:[%s3 + $0xc] sm:$0xf]
  %v121 = vld [vmem:[%s3 + $0x10] sm:$0xf]
  %v122 = vld [vmem:[%s3 + $0x14] sm:$0xf]
  %v123 = vld [vmem:[%s3 + $0x18] sm:$0xf]
  %v124 = vld [vmem:[%s3 + $0x1c] sm:$0xf]
  %v125 = vld [vmem:[%s3 + $0x20] sm:$0xf]
  %v126 = vld [vmem:[%s3 + $0x24] sm:$0xf]
  %v127 = vld [vmem:[%s3 + $0x28] sm:$0xf]
  %v128 = vld [vmem:[%s3 + $0x2c] sm:$0xf]
  %v129 = vld [vmem:[%s3 + $0x30] sm:$0xf]
  %v130 = vld [vmem:[%s3 + $0x34] sm:$0xf]
  %v131 = vld [vmem:[%s3 + $0x38] sm:$0xf]
  %v132 = vld [vmem:[%s3 + $0x3c] sm:$0xf]
  %v133 = vld [vmem:[%s4] sm:$0x1]
  %v134 = vpack.c.bf16 %v116, %v116
  %v136 = vperm.slane %v133, 0
  %v154 = vunpack.c.l.b16 %v117
  %v155 = vunpack.c.l.b16 %v118
  %v156 = vunpack.c.l.b16 %v119
  %v157 = vunpack.c.l.b16 %v120
  %v158 = vunpack.c.l.b16 %v121
  %v159 = vunpack.c.l.b16 %v122
  %v160 = vunpack.c.l.b16 %v123
  %v161 = vunpack.c.l.b16 %v124
  %v162 = vunpack.c.l.b16 %v125
  %v163 = vunpack.c.l.b16 %v126
  %v164 = vunpack.c.l.b16 %v127
  %v165 = vunpack.c.l.b16 %v128
  %v166 = vunpack.c.l.b16 %v129
  %v167 = vunpack.c.l.b16 %v130
  %v168 = vunpack.c.l.b16 %v131
  %v169 = vunpack.c.l.b16 %v132
  %v170 = vpack.c.b16 %v155, %v154
  %v171 = vpack.c.b16 %v157, %v156
  %v172 = vpack.c.b16 %v159, %v158
  %v173 = vpack.c.b16 %v161, %v160
  %v174 = vpack.c.b16 %v163, %v162
  %v175 = vpack.c.b16 %v165, %v164
  %v176 = vpack.c.b16 %v167, %v166
  %v177 = vpack.c.b16 %v169, %v168
  %186 = vmatpush.bf16.msra.mxu0 %v177
  %187 = vmatpush.bf16.msra.mxu0 %v176
  %188 = vmatpush.bf16.msra.mxu0 %v175
  %189 = vmatpush.bf16.msra.mxu0 %v174
  %190 = vmatpush.bf16.msra.mxu0 %v173
  %191 = vmatpush.bf16.msra.mxu0 %v172
  %192 = vmatpush.bf16.msra.mxu0 %v171
  %193 = vmatpush.bf16.msra.mxu0 %v170
  %194 = vmatmul.bf16.gmra.mxu0 %v134
  %v195 = vpop.f32.mrf.mxu0
  %v196 = vadd.f32 %v136, %v195
  %v197 = vpop.f32.mrf.mxu0
  %198 = vdwg.mxu0
  %v199 = vld [vmem:[%s5] sm:$0x1]
  %v200 = vld [vmem:[%s6] sm:$0x1]
  %v202 = vperm.slane %v199, 0
  %v204 = vmul.f32 %v196, %v202
  %v206 = vperm.slane %v200, 0
  %v208 = vadd.f32 %v204, %v206
  %v209 = vmax.f32 %v208, 0.0
  %v210 = vadd.f32 %v209, %v116
  %v211 = vld [vmem:[%s7] sm:$0xf]
  %v212 = vld [vmem:[%s7 + $0x4] sm:$0xf]
  %v213 = vld [vmem:[%s7 + $0x8] sm:$0xf]
  %v214 = vld [vmem:[%s7 + $0xc] sm:$0xf]
  %v215 = vld [vmem:[%s7 + $0x10] sm:$0xf]
  %v216 = vld [vmem:[%s7 + $0x14] sm:$0xf]
  %v217 = vld [vmem:[%s7 + $0x18] sm:$0xf]
  %v218 = vld [vmem:[%s7 + $0x1c] sm:$0xf]
  %v219 = vld [vmem:[%s7 + $0x20] sm:$0xf]
  %v220 = vld [vmem:[%s7 + $0x24] sm:$0xf]
  %v221 = vld [vmem:[%s7 + $0x28] sm:$0xf]
  %v222 = vld [vmem:[%s7 + $0x2c] sm:$0xf]
  %v223 = vld [vmem:[%s7 + $0x30] sm:$0xf]
  %v224 = vld [vmem:[%s7 + $0x34] sm:$0xf]
  %v225 = vld [vmem:[%s7 + $0x38] sm:$0xf]
  %v226 = vld [vmem:[%s7 + $0x3c] sm:$0xf]
  %v227 = vld [vmem:[%s8] sm:$0x1]
  %v228 = vpack.c.bf16 %v210, %v210
  %v230 = vperm.slane %v227, 0
  %v248 = vunpack.c.l.b16 %v211
  %v249 = vunpack.c.l.b16 %v212
  %v250 = vunpack.c.l.b16 %v213
  %v251 = vunpack.c.l.b16 %v214
  %v252 = vunpack.c.l.b16 %v215
  %v253 = vunpack.c.l.b16 %v216
  %v254 = vunpack.c.l.b16 %v217
  %v255 = vunpack.c.l.b16 %v218
  %v256 = vunpack.c.l.b16 %v219
  %v257 = vunpack.c.l.b16 %v220
  %v258 = vunpack.c.l.b16 %v221
  %v259 = vunpack.c.l.b16 %v222
  %v260 = vunpack.c.l.b16 %v223
  %v261 = vunpack.c.l.b16 %v224
  %v262 = vunpack.c.l.b16 %v225
  %v263 = vunpack.c.l.b16 %v226
  %v264 = vpack.c.b16 %v249, %v248
  %v265 = vpack.c.b16 %v251, %v250
  %v266 = vpack.c.b16 %v253, %v252
  %v267 = vpack.c.b16 %v255, %v254
  %v268 = vpack.c.b16 %v257, %v256
  %v269 = vpack.c.b16 %v259, %v258
  %v270 = vpack.c.b16 %v261, %v260
  %v271 = vpack.c.b16 %v263, %v262
  %280 = vmatpush.bf16.msra.mxu0 %v271
  %281 = vmatpush.bf16.msra.mxu0 %v270
  %282 = vmatpush.bf16.msra.mxu0 %v269
  %283 = vmatpush.bf16.msra.mxu0 %v268
  %284 = vmatpush.bf16.msra.mxu0 %v267
  %285 = vmatpush.bf16.msra.mxu0 %v266
  %286 = vmatpush.bf16.msra.mxu0 %v265
  %287 = vmatpush.bf16.msra.mxu0 %v264
  %288 = vmatmul.bf16.gmra.mxu0 %v228
  %v289 = vpop.f32.mrf.mxu0
  %v290 = vadd.f32 %v230, %v289
  %v291 = vpop.f32.mrf.mxu0
  %292 = vdwg.mxu0
  %v293 = vlaneseq
  %v294 = vshrl.u32 %v293, 7
  %s295 = smul.u32 0, 8
  %v296 = vstv %s295
  %v297 = vadd.s32 %v294, %v296
  %vm298 = vcmp.lt.s32.totalorder %v297, 6
  %v299 = vsel %vm298, 1, 0
  %vm300 = vcmp.eq.s32.totalorder %v299, 1
  %v301 = vsel %vm300, %v290, 0.0
  %v302 = vadd.f32 %v301, 0.0
  %v303 = vmul.f32 %v301, %v301
  %v304 = vadd.f32 %v303, 0.0
  %305 = vst [vmem:[%s9] sm:$0xff] %v302
  %306 = vst [vmem:[%s10] sm:$0xff] %v304
  // Predicated region
  $region38: #{residual_network_forward.4} parent=0 // pred_check
    _
  $region39: #{residual_network_forward.4} parent=0 // pred_check_branch
    %308 = sbr.rel (0) target = $region41
  $region40: #{residual_network_forward.4} parent=0 // pred_region
    _
  $region41: #{residual_network_forward.4} parent=0 // pred_fallthru
    _
  // Predicated region
  $region42: #{residual_network_forward.4} parent=0 // pred_check
    _
  $region43: #{residual_network_forward.4} parent=0 // pred_check_branch
    %310 = sbr.rel (0) target = $region45
  $region44: #{residual_network_forward.4} parent=0 // pred_region
    _
  $region45: #{residual_network_forward.4} parent=0 // pred_fallthru
    _
  // Predicated region
  $region46: #{residual_network_forward.4} parent=0 // pred_check
    _
  $region47: #{residual_network_forward.4} parent=0 // pred_check_branch
    %312 = sbr.rel (0) target = $region49
  $region48: #{residual_network_forward.4} parent=0 // pred_region
    _
  $region49: #{residual_network_forward.4} parent=0 // pred_fallthru
    _
  // Predicated region
  $region50: #{residual_network_forward.4} parent=0 // pred_check
    _
  $region51: #{residual_network_forward.4} parent=0 // pred_check_branch
    %314 = sbr.rel (0) target = $region53
  $region52: #{residual_network_forward.4} parent=0 // pred_region
    _
  $region53: #{residual_network_forward.4} parent=0 // pred_fallthru
    _

// kernel: residual_network_forward.5
$region0: #{residual_network_forward.5}
  #allocation0 [shape = 'u32[]', space=smem, size = 0x4, offset = 0x4, fixed_abs, tag = 'smem constant byte address 0x4 - core index']
  #allocation1 [shape = 'u32[72,128]{1,0:T(1,128)}', space=vmem, size = 0x9000, scoped, tag = 'internal scratch']
  %s0 = inlined_call_operand.vmem [shape: bf16[8,128], index: 0, kind: input, shape index: {}]
  %s1 = inlined_call_operand.vmem [shape: bf16[128,128], index: 1, kind: input, shape index: {}]
  %s2 = inlined_call_operand.vmem [shape: f32[1,128], index: 2, kind: input, shape index: {}]
  %s3 = inlined_call_operand.vmem [shape: bf16[128,128], index: 3, kind: input, shape index: {}]
  %s4 = inlined_call_operand.vmem [shape: f32[1,128], index: 4, kind: input, shape index: {}]
  %s5 = inlined_call_operand.vmem [shape: f32[1,128], index: 5, kind: input, shape index: {}]
  %s6 = inlined_call_operand.vmem [shape: f32[1,128], index: 6, kind: input, shape index: {}]
  %s7 = inlined_call_operand.vmem [shape: bf16[128,128], index: 7, kind: input, shape index: {}]
  %s8 = inlined_call_operand.vmem [shape: f32[1,128], index: 8, kind: input, shape index: {}]
  %s9 = inlined_call_operand.vmem [shape: f32[1,128], index: 9, kind: input, shape index: {}]
  %s10 = inlined_call_operand.vmem [shape: f32[1,128], index: 10, kind: input, shape index: {}]
  %s11 = inlined_call_operand.vmem [shape: bf16[128,128], index: 11, kind: input, shape index: {}]
  %s12 = inlined_call_operand.vmem [shape: f32[1,128], index: 12, kind: input, shape index: {}]
  %s13 = inlined_call_operand.vmem [shape: f32[8,128], index: 13, kind: output, shape index: {}]
  %s14 = sld [smem:[#allocation0]]
  $region62: #{residual_network_forward.5} parent=0
    _
  %s16 = ssub.s32 1, %s14
  %s17 = scalar_select 0, %s16, %s14
  // Predicated region
  $region2: #{residual_network_forward.5} parent=0 // pred_check
    _
  $region3: #{residual_network_forward.5} parent=0 // pred_check_branch
    %19 = sbr.rel (0) target = $region5
  $region4: #{residual_network_forward.5} parent=0 // pred_region
    _
  $region5: #{residual_network_forward.5} parent=0 // pred_fallthru
    _
  // Predicated region
  $region6: #{residual_network_forward.5} parent=0 // pred_check
    _
  $region7: #{residual_network_forward.5} parent=0 // pred_check_branch
    %21 = sbr.rel (0) target = $region9
  $region8: #{residual_network_forward.5} parent=0 // pred_region
    _
  $region9: #{residual_network_forward.5} parent=0 // pred_fallthru
    _
  // Predicated region
  $region10: #{residual_network_forward.5} parent=0 // pred_check
    _
  $region11: #{residual_network_forward.5} parent=0 // pred_check_branch
    %23 = sbr.rel (0) target = $region13
  $region12: #{residual_network_forward.5} parent=0 // pred_region
    _
  $region13: #{residual_network_forward.5} parent=0 // pred_fallthru
    _
  // Predicated region
  $region14: #{residual_network_forward.5} parent=0 // pred_check
    _
  $region15: #{residual_network_forward.5} parent=0 // pred_check_branch
    %25 = sbr.rel (0) target = $region17
  $region16: #{residual_network_forward.5} parent=0 // pred_region
    _
  $region17: #{residual_network_forward.5} parent=0 // pred_fallthru
    _
  // Predicated region
  $region18: #{residual_network_forward.5} parent=0 // pred_check
    _
  $region19: #{residual_network_forward.5} parent=0 // pred_check_branch
    %27 = sbr.rel (0) target = $region21
  $region20: #{residual_network_forward.5} parent=0 // pred_region
    _
  $region21: #{residual_network_forward.5} parent=0 // pred_fallthru
    _
  // Predicated region
  $region22: #{residual_network_forward.5} parent=0 // pred_check
    _
  $region23: #{residual_network_forward.5} parent=0 // pred_check_branch
    %29 = sbr.rel (0) target = $region25
  $region24: #{residual_network_forward.5} parent=0 // pred_region
    _
  $region25: #{residual_network_forward.5} parent=0 // pred_fallthru
    _
  // Predicated region
  $region26: #{residual_network_forward.5} parent=0 // pred_check
    _
  $region27: #{residual_network_forward.5} parent=0 // pred_check_branch
    %31 = sbr.rel (0) target = $region29
  $region28: #{residual_network_forward.5} parent=0 // pred_region
    _
  $region29: #{residual_network_forward.5} parent=0 // pred_fallthru
    _
  // Predicated region
  $region30: #{residual_network_forward.5} parent=0 // pred_check
    _
  $region31: #{residual_network_forward.5} parent=0 // pred_check_branch
    %33 = sbr.rel (0) target = $region33
  $region32: #{residual_network_forward.5} parent=0 // pred_region
    _
  $region33: #{residual_network_forward.5} parent=0 // pred_fallthru
    _
  // Predicated region
  $region34: #{residual_network_forward.5} parent=0 // pred_check
    _
  $region35: #{residual_network_forward.5} parent=0 // pred_check_branch
    %35 = sbr.rel (0) target = $region37
  $region36: #{residual_network_forward.5} parent=0 // pred_region
    _
  $region37: #{residual_network_forward.5} parent=0 // pred_fallthru
    _
  // Predicated region
  $region38: #{residual_network_forward.5} parent=0 // pred_check
    _
  $region39: #{residual_network_forward.5} parent=0 // pred_check_branch
    %37 = sbr.rel (0) target = $region41
  $region40: #{residual_network_forward.5} parent=0 // pred_region
    _
  $region41: #{residual_network_forward.5} parent=0 // pred_fallthru
    _
  // Predicated region
  $region42: #{residual_network_forward.5} parent=0 // pred_check
    _
  $region43: #{residual_network_forward.5} parent=0 // pred_check_branch
    %39 = sbr.rel (0) target = $region45
  $region44: #{residual_network_forward.5} parent=0 // pred_region
    _
  $region45: #{residual_network_forward.5} parent=0 // pred_fallthru
    _
  // Predicated region
  $region46: #{residual_network_forward.5} parent=0 // pred_check
    _
  $region47: #{residual_network_forward.5} parent=0 // pred_check_branch
    %41 = sbr.rel (0) target = $region49
  $region48: #{residual_network_forward.5} parent=0 // pred_region
    _
  $region49: #{residual_network_forward.5} parent=0 // pred_fallthru
    _
  // Predicated region
  $region50: #{residual_network_forward.5} parent=0 // pred_check
    _
  $region51: #{residual_network_forward.5} parent=0 // pred_check_branch
    %43 = sbr.rel (0) target = $region53
  $region52: #{residual_network_forward.5} parent=0 // pred_region
    _
  $region53: #{residual_network_forward.5} parent=0 // pred_fallthru
    _
  %v44 = vld [vmem:[%s0] sm:$0xf]
  %v45 = vld [vmem:[%s1] sm:$0xf]
  %v46 = vld [vmem:[%s1 + $0x4] sm:$0xf]
  %v47 = vld [vmem:[%s1 + $0x8] sm:$0xf]
  %v48 = vld [vmem:[%s1 + $0xc] sm:$0xf]
  %v49 = vld [vmem:[%s1 + $0x10] sm:$0xf]
  %v50 = vld [vmem:[%s1 + $0x14] sm:$0xf]
  %v51 = vld [vmem:[%s1 + $0x18] sm:$0xf]
  %v52 = vld [vmem:[%s1 + $0x1c] sm:$0xf]
  %v53 = vld [vmem:[%s1 + $0x20] sm:$0xf]
  %v54 = vld [vmem:[%s1 + $0x24] sm:$0xf]
  %v55 = vld [vmem:[%s1 + $0x28] sm:$0xf]
  %v56 = vld [vmem:[%s1 + $0x2c] sm:$0xf]
  %v57 = vld [vmem:[%s1 + $0x30] sm:$0xf]
  %v58 = vld [vmem:[%s1 + $0x34] sm:$0xf]
  %v59 = vld [vmem:[%s1 + $0x38] sm:$0xf]
  %v60 = vld [vmem:[%s1 + $0x3c] sm:$0xf]
  %v61 = vld [vmem:[%s2] sm:$0x1]
  %v63 = vperm.slane %v61, 0
  %v81 = vunpack.c.l.b16 %v45
  %v82 = vunpack.c.l.b16 %v46
  %v83 = vunpack.c.l.b16 %v47
  %v84 = vunpack.c.l.b16 %v48
  %v85 = vunpack.c.l.b16 %v49
  %v86 = vunpack.c.l.b16 %v50
  %v87 = vunpack.c.l.b16 %v51
  %v88 = vunpack.c.l.b16 %v52
  %v89 = vunpack.c.l.b16 %v53
  %v90 = vunpack.c.l.b16 %v54
  %v91 = vunpack.c.l.b16 %v55
  %v92 = vunpack.c.l.b16 %v56
  %v93 = vunpack.c.l.b16 %v57
  %v94 = vunpack.c.l.b16 %v58
  %v95 = vunpack.c.l.b16 %v59
  %v96 = vunpack.c.l.b16 %v60
  %v97 = vpack.c.b16 %v82, %v81
  %v98 = vpack.c.b16 %v84, %v83
  %v99 = vpack.c.b16 %v86, %v85
  %v100 = vpack.c.b16 %v88, %v87
  %v101 = vpack.c.b16 %v90, %v89
  %v102 = vpack.c.b16 %v92, %v91
  %v103 = vpack.c.b16 %v94, %v93
  %v104 = vpack.c.b16 %v96, %v95
  %113 = vmatpush.bf16.msra.mxu0 %v104
  %114 = vmatpush.bf16.msra.mxu0 %v103
  %115 = vmatpush.bf16.msra.mxu0 %v102
  %116 = vmatpush.bf16.msra.mxu0 %v101
  %117 = vmatpush.bf16.msra.mxu0 %v100
  %118 = vmatpush.bf16.msra.mxu0 %v99
  %119 = vmatpush.bf16.msra.mxu0 %v98
  %120 = vmatpush.bf16.msra.mxu0 %v97
  %121 = vmatmul.bf16.gmra.mxu0 %v44
  %v122 = vpop.f32.mrf.mxu0
  %v123 = vadd.f32 %v63, %v122
  %v124 = vpop.f32.mrf.mxu0
  %125 = vdwg.mxu0
  %v126 = vmax.f32 %v123, 0.0
  %v127 = vld [vmem:[%s3] sm:$0xf]
  %v128 = vld [vmem:[%s3 + $0x4] sm:$0xf]
  %v129 = vld [vmem:[%s3 + $0x8] sm:$0xf]
  %v130 = vld [vmem:[%s3 + $0xc] sm:$0xf]
  %v131 = vld [vmem:[%s3 + $0x10] sm:$0xf]
  %v132 = vld [vmem:[%s3 + $0x14] sm:$0xf]
  %v133 = vld [vmem:[%s3 + $0x18] sm:$0xf]
  %v134 = vld [vmem:[%s3 + $0x1c] sm:$0xf]
  %v135 = vld [vmem:[%s3 + $0x20] sm:$0xf]
  %v136 = vld [vmem:[%s3 + $0x24] sm:$0xf]
  %v137 = vld [vmem:[%s3 + $0x28] sm:$0xf]
  %v138 = vld [vmem:[%s3 + $0x2c] sm:$0xf]
  %v139 = vld [vmem:[%s3 + $0x30] sm:$0xf]
  %v140 = vld [vmem:[%s3 + $0x34] sm:$0xf]
  %v141 = vld [vmem:[%s3 + $0x38] sm:$0xf]
  %v142 = vld [vmem:[%s3 + $0x3c] sm:$0xf]
  %v143 = vld [vmem:[%s4] sm:$0x1]
  %v144 = vpack.c.bf16 %v126, %v126
  %v146 = vperm.slane %v143, 0
  %v164 = vunpack.c.l.b16 %v127
  %v165 = vunpack.c.l.b16 %v128
  %v166 = vunpack.c.l.b16 %v129
  %v167 = vunpack.c.l.b16 %v130
  %v168 = vunpack.c.l.b16 %v131
  %v169 = vunpack.c.l.b16 %v132
  %v170 = vunpack.c.l.b16 %v133
  %v171 = vunpack.c.l.b16 %v134
  %v172 = vunpack.c.l.b16 %v135
  %v173 = vunpack.c.l.b16 %v136
  %v174 = vunpack.c.l.b16 %v137
  %v175 = vunpack.c.l.b16 %v138
  %v176 = vunpack.c.l.b16 %v139
  %v177 = vunpack.c.l.b16 %v140
  %v178 = vunpack.c.l.b16 %v141
  %v179 = vunpack.c.l.b16 %v142
  %v180 = vpack.c.b16 %v165, %v164
  %v181 = vpack.c.b16 %v167, %v166
  %v182 = vpack.c.b16 %v169, %v168
  %v183 = vpack.c.b16 %v171, %v170
  %v184 = vpack.c.b16 %v173, %v172
  %v185 = vpack.c.b16 %v175, %v174
  %v186 = vpack.c.b16 %v177, %v176
  %v187 = vpack.c.b16 %v179, %v178
  %196 = vmatpush.bf16.msra.mxu0 %v187
  %197 = vmatpush.bf16.msra.mxu0 %v186
  %198 = vmatpush.bf16.msra.mxu0 %v185
  %199 = vmatpush.bf16.msra.mxu0 %v184
  %200 = vmatpush.bf16.msra.mxu0 %v183
  %201 = vmatpush.bf16.msra.mxu0 %v182
  %202 = vmatpush.bf16.msra.mxu0 %v181
  %203 = vmatpush.bf16.msra.mxu0 %v180
  %204 = vmatmul.bf16.gmra.mxu0 %v144
  %v205 = vpop.f32.mrf.mxu0
  %v206 = vadd.f32 %v146, %v205
  %v207 = vpop.f32.mrf.mxu0
  %208 = vdwg.mxu0
  %v209 = vld [vmem:[%s5] sm:$0x1]
  %v210 = vld [vmem:[%s6] sm:$0x1]
  %v212 = vperm.slane %v209, 0
  %v214 = vmul.f32 %v206, %v212
  %v216 = vperm.slane %v210, 0
  %v218 = vadd.f32 %v214, %v216
  %v219 = vmax.f32 %v218, 0.0
  %v220 = vadd.f32 %v219, %v126
  %v221 = vld [vmem:[%s7] sm:$0xf]
  %v222 = vld [vmem:[%s7 + $0x4] sm:$0xf]
  %v223 = vld [vmem:[%s7 + $0x8] sm:$0xf]
  %v224 = vld [vmem:[%s7 + $0xc] sm:$0xf]
  %v225 = vld [vmem:[%s7 + $0x10] sm:$0xf]
  %v226 = vld [vmem:[%s7 + $0x14] sm:$0xf]
  %v227 = vld [vmem:[%s7 + $0x18] sm:$0xf]
  %v228 = vld [vmem:[%s7 + $0x1c] sm:$0xf]
  %v229 = vld [vmem:[%s7 + $0x20] sm:$0xf]
  %v230 = vld [vmem:[%s7 + $0x24] sm:$0xf]
  %v231 = vld [vmem:[%s7 + $0x28] sm:$0xf]
  %v232 = vld [vmem:[%s7 + $0x2c] sm:$0xf]
  %v233 = vld [vmem:[%s7 + $0x30] sm:$0xf]
  %v234 = vld [vmem:[%s7 + $0x34] sm:$0xf]
  %v235 = vld [vmem:[%s7 + $0x38] sm:$0xf]
  %v236 = vld [vmem:[%s7 + $0x3c] sm:$0xf]
  %v237 = vld [vmem:[%s8] sm:$0x1]
  %v238 = vpack.c.bf16 %v220, %v220
  %v240 = vperm.slane %v237, 0
  %v258 = vunpack.c.l.b16 %v221
  %v259 = vunpack.c.l.b16 %v222
  %v260 = vunpack.c.l.b16 %v223
  %v261 = vunpack.c.l.b16 %v224
  %v262 = vunpack.c.l.b16 %v225
  %v263 = vunpack.c.l.b16 %v226
  %v264 = vunpack.c.l.b16 %v227
  %v265 = vunpack.c.l.b16 %v228
  %v266 = vunpack.c.l.b16 %v229
  %v267 = vunpack.c.l.b16 %v230
  %v268 = vunpack.c.l.b16 %v231
  %v269 = vunpack.c.l.b16 %v232
  %v270 = vunpack.c.l.b16 %v233
  %v271 = vunpack.c.l.b16 %v234
  %v272 = vunpack.c.l.b16 %v235
  %v273 = vunpack.c.l.b16 %v236
  %v274 = vpack.c.b16 %v259, %v258
  %v275 = vpack.c.b16 %v261, %v260
  %v276 = vpack.c.b16 %v263, %v262
  %v277 = vpack.c.b16 %v265, %v264
  %v278 = vpack.c.b16 %v267, %v266
  %v279 = vpack.c.b16 %v269, %v268
  %v280 = vpack.c.b16 %v271, %v270
  %v281 = vpack.c.b16 %v273, %v272
  %290 = vmatpush.bf16.msra.mxu0 %v281
  %291 = vmatpush.bf16.msra.mxu0 %v280
  %292 = vmatpush.bf16.msra.mxu0 %v279
  %293 = vmatpush.bf16.msra.mxu0 %v278
  %294 = vmatpush.bf16.msra.mxu0 %v277
  %295 = vmatpush.bf16.msra.mxu0 %v276
  %296 = vmatpush.bf16.msra.mxu0 %v275
  %297 = vmatpush.bf16.msra.mxu0 %v274
  %298 = vmatmul.bf16.gmra.mxu0 %v238
  %v299 = vpop.f32.mrf.mxu0
  %v300 = vadd.f32 %v240, %v299
  %v301 = vpop.f32.mrf.mxu0
  %302 = vdwg.mxu0
  %v303 = vld [vmem:[%s9] sm:$0x1]
  %v304 = vld [vmem:[%s10] sm:$0x1]
  %v306 = vperm.slane %v303, 0
  %v308 = vmul.f32 %v300, %v306
  %v310 = vperm.slane %v304, 0
  %v312 = vadd.f32 %v308, %v310
  %v313 = vmax.f32 %v312, 0.0
  %v314 = vadd.f32 %v313, %v220
  %v315 = vpack.c.bf16 %v314, %v314
  %v316 = vld [vmem:[%s11] sm:$0xf]
  %v317 = vld [vmem:[%s11 + $0x4] sm:$0xf]
  %v318 = vld [vmem:[%s11 + $0x8] sm:$0xf]
  %v319 = vld [vmem:[%s11 + $0xc] sm:$0xf]
  %v320 = vld [vmem:[%s11 + $0x10] sm:$0xf]
  %v321 = vld [vmem:[%s11 + $0x14] sm:$0xf]
  %v322 = vld [vmem:[%s11 + $0x18] sm:$0xf]
  %v323 = vld [vmem:[%s11 + $0x1c] sm:$0xf]
  %v324 = vld [vmem:[%s11 + $0x20] sm:$0xf]
  %v325 = vld [vmem:[%s11 + $0x24] sm:$0xf]
  %v326 = vld [vmem:[%s11 + $0x28] sm:$0xf]
  %v327 = vld [vmem:[%s11 + $0x2c] sm:$0xf]
  %v328 = vld [vmem:[%s11 + $0x30] sm:$0xf]
  %v329 = vld [vmem:[%s11 + $0x34] sm:$0xf]
  %v330 = vld [vmem:[%s11 + $0x38] sm:$0xf]
  %v331 = vld [vmem:[%s11 + $0x3c] sm:$0xf]
  %v332 = vld [vmem:[%s12] sm:$0x1]
  %v334 = vperm.slane %v332, 0
  %v352 = vunpack.c.l.b16 %v316
  %v353 = vunpack.c.l.b16 %v317
  %v354 = vunpack.c.l.b16 %v318
  %v355 = vunpack.c.l.b16 %v319
  %v356 = vunpack.c.l.b16 %v320
  %v357 = vunpack.c.l.b16 %v321
  %v358 = vunpack.c.l.b16 %v322
  %v359 = vunpack.c.l.b16 %v323
  %v360 = vunpack.c.l.b16 %v324
  %v361 = vunpack.c.l.b16 %v325
  %v362 = vunpack.c.l.b16 %v326
  %v363 = vunpack.c.l.b16 %v327
  %v364 = vunpack.c.l.b16 %v328
  %v365 = vunpack.c.l.b16 %v329
  %v366 = vunpack.c.l.b16 %v330
  %v367 = vunpack.c.l.b16 %v331
  %v368 = vpack.c.b16 %v353, %v352
  %v369 = vpack.c.b16 %v355, %v354
  %v370 = vpack.c.b16 %v357, %v356
  %v371 = vpack.c.b16 %v359, %v358
  %v372 = vpack.c.b16 %v361, %v360
  %v373 = vpack.c.b16 %v363, %v362
  %v374 = vpack.c.b16 %v365, %v364
  %v375 = vpack.c.b16 %v367, %v366
  %384 = vmatpush.bf16.msra.mxu0 %v375
  %385 = vmatpush.bf16.msra.mxu0 %v374
  %386 = vmatpush.bf16.msra.mxu0 %v373
  %387 = vmatpush.bf16.msra.mxu0 %v372
  %388 = vmatpush.bf16.msra.mxu0 %v371
  %389 = vmatpush.bf16.msra.mxu0 %v370
  %390 = vmatpush.bf16.msra.mxu0 %v369
  %391 = vmatpush.bf16.msra.mxu0 %v368
  %392 = vmatmul.bf16.gmra.mxu0 %v315
  %v393 = vpop.f32.mrf.mxu0
  %v394 = vadd.f32 %v334, %v393
  %v395 = vpop.f32.mrf.mxu0
  %396 = vdwg.mxu0
  %397 = vst [vmem:[%s13] sm:$0xff] %v394
  // Predicated region
  $region54: #{residual_network_forward.5} parent=0 // pred_check
    _
  $region55: #{residual_network_forward.5} parent=0 // pred_check_branch
    %399 = sbr.rel (0) target = $region57
  $region56: #{residual_network_forward.5} parent=0 // pred_region
    _
  $region57: #{residual_network_forward.5} parent=0 // pred_fallthru
    _
  // Predicated region
  $region58: #{residual_network_forward.5} parent=0 // pred_check
    _
  $region59: #{residual_network_forward.5} parent=0 // pred_check_branch
    %401 = sbr.rel (0) target = $region61
  $region60: #{residual_network_forward.5} parent=0 // pred_region
    _
  $region61: #{residual_network_forward.5} parent=0 // pred_fallthru
    _

</llo_original>
